<compile_context>
chip_gen: v7x
topology: tpu7x:2x2x1
jax: 0.10.0
libtpu: 0.0.40
codegen_flags: <defaults>
</compile_context>

<pallas_src>
import math
import functools

import jax
import jax.numpy as jnp
from jax import lax
from jax.experimental import pallas as pl
from jax.experimental.pallas import tpu as pltpu

N_FEATURES = 2048
N_EXTREME = 5
MLP1 = 200
MLP2 = 100
LANE = 128          # lane width of the per-extreme scratch rows


def _select_extremes(comb, k, largest):
    """(1, LANE) f32 row: lanes 0..k-1 hold the k smallest (ascending) or the
    k largest (descending) entries of `comb`; remaining lanes hold +/-inf."""
    w = comb.shape[1]
    idx = lax.broadcasted_iota(jnp.int32, comb.shape, 1)
    lane = lax.broadcasted_iota(jnp.int32, (1, LANE), 1)
    fill = jnp.float32(-jnp.inf) if largest else jnp.float32(jnp.inf)
    reduce_fn = jnp.max if largest else jnp.min

    out = jnp.full((1, LANE), fill, jnp.float32)
    mask = jnp.ones(comb.shape, jnp.bool_)
    for j in range(k):
        cur = reduce_fn(jnp.where(mask, comb, fill), axis=1, keepdims=True)  # (1,1)
        hit = jnp.logical_and(mask, comb == cur)
        first = jnp.min(jnp.where(hit, idx, w), axis=1, keepdims=True)
        mask = jnp.logical_and(mask, idx != first)
        out = jnp.where(lane == j, cur, out)
    return out


def chowder_kernel(x_ref, wconv_ref, w1p_ref, b1_ref, w2_ref, b2_ref,
                   w3_ref, b3_ref, out_ref, lo_ref, hi_ref, *,
                   n_tiles, n_extreme):
    i = pl.program_id(0)
    last = pl.num_programs(0) - 1
    tm = x_ref.shape[0]

    @pl.when(i == 0)
    def _init():
        lo_ref[...] = jnp.full((1, LANE), jnp.inf, jnp.float32)
        hi_ref[...] = jnp.full((1, LANE), -jnp.inf, jnp.float32)

    # Per-tile scores of this block: (1, 2048) . (TM, 2048)^T -> (1, TM),
    # lane-major, f32 accumulation regardless of the streaming dtype.
    sc = lax.dot_general(wconv_ref[...], x_ref[...],
                         dimension_numbers=(((1,), (1,)), ((), ())),
                         preferred_element_type=jnp.float32)

    def merge(sc_lo, sc_hi):
        # Block-local pre-select (not loop-carried; overlaps the next block's
        # DMA), then a tiny (1, 2*LANE) merge on the carried scratches.
        blk_lo = _select_extremes(sc_lo, n_extreme, largest=False)
        blk_hi = _select_extremes(sc_hi, n_extreme, largest=True)
        lo_ref[...] = _select_extremes(
            jnp.concatenate([lo_ref[...], blk_lo], axis=1),
            n_extreme, largest=False)
        hi_ref[...] = _select_extremes(
            jnp.concatenate([hi_ref[...], blk_hi], axis=1),
            n_extreme, largest=True)

    if n_tiles % tm != 0:
        # Ragged tail: the masking (iota + wheres) only runs on the last step.
        @pl.when(i != last)
        def _merge_full():
            merge(sc, sc)

        @pl.when(i == last)
        def _merge_masked():
            gidx = i * tm + lax.broadcasted_iota(jnp.int32, (1, tm), 1)
            valid = gidx < n_tiles
            merge(jnp.where(valid, sc, jnp.inf),
                  jnp.where(valid, sc, -jnp.inf))
    else:
        merge(sc, sc)

    # MLP head runs once, on the last grid step (Dropout == identity in eval).
    @pl.when(i == last)
    def _head():
        lane = lax.broadcasted_iota(jnp.int32, (1, LANE), 1)
        keep = lane < n_extreme
        lo = jnp.where(keep, lo_ref[...], 0.0)        # zero the +/-inf filler
        hi = jnp.where(keep, hi_ref[...], 0.0)
        ext = jnp.concatenate([lo, hi], axis=1)       # (1, 2*LANE)
        h1 = jax.nn.sigmoid(
            jnp.dot(ext, w1p_ref[...], preferred_element_type=jnp.float32)
            + b1_ref[...])
        h2 = jax.nn.sigmoid(
            jnp.dot(h1, w2_ref[...], preferred_element_type=jnp.float32)
            + b2_ref[...])
        out_ref[...] = (jnp.dot(h2, w3_ref[...],
                                preferred_element_type=jnp.float32)
                        + b3_ref[...])


def chowder_forward(x, params, n_extreme=N_EXTREME, block_tiles=None):
    """x: (n_tiles, 2048), f32 or bf16 (streaming dtype == x.dtype) -> (1,) logits.

    To get the bf16 bandwidth win, pass a bag that is already stored in bf16;
    this function deliberately does NOT cast x (a host-side cast would add a
    full extra HBM pass and negate the win).
    """
    wconv, w1, b1, w2, b2, w3, b3 = params
    n_tiles, n_features = x.shape
    if n_tiles < n_extreme:
        raise ValueError("CHOWDER needs at least n_extreme tiles per bag")
    k = n_extreme
    itemsize = jnp.dtype(x.dtype).itemsize

    # Score weight streamed at the bag's dtype (tiny: n_features elements).
    wconv = wconv.astype(x.dtype)

    # First MLP weight padded/reordered to consume the [lo | hi] scratch layout:
    #   rows 0..k-1          <- w1 rows 0..k-1            (k smallest, ascending)
    #   rows LANE..LANE+k-1  <- w1 rows 2k-1 .. k         (hi scratch is descending)
    w1p = jnp.zeros((2 * LANE, w1.shape[1]), jnp.float32)
    w1p = w1p.at[:k].set(w1[:k].astype(jnp.float32))
    w1p = w1p.at[LANE:LANE + k].set(w1[k:2 * k][::-1].astype(jnp.float32))

    if block_tiles is None:
        # ~8 MiB per x pipeline buffer: 1024 tiles in f32, 2048 in bf16.
        block_tiles = max(LANE, (8 << 20) // (n_features * itemsize))

    tm = min(block_tiles, n_tiles)
    if tm < n_tiles:
        # Sublane-aligned blocks when tiling: 8 for 32-bit, 16 for 16-bit dtypes.
        align = 8 if itemsize >= 4 else (16 if itemsize == 2 else 32)
        tm = max(align, (tm // align) * align)
    grid = (pl.cdiv(n_tiles, tm),)

    # Explicit scoped-VMEM budget: 2 double-buffered x blocks + weights + slack.
    # Fits v5e's 16 MiB default scoped VMEM (raised here), v6e's 32 MiB, and
    # stays well under v7x's 64 MiB physical VMEM.
    x_block_bytes = tm * n_features * itemsize
    vmem_limit = int(2 * x_block_bytes + (4 << 20))
    vmem_limit = min(max(vmem_limit, 16 << 20), 48 << 20)

    kernel = functools.partial(chowder_kernel, n_tiles=n_tiles, n_extreme=k)
    out = pl.pallas_call(
        kernel,
        out_shape=jax.ShapeDtypeStruct((1, 1), jnp.float32),
        grid=grid,
        in_specs=[
            pl.BlockSpec((tm, n_features), lambda i: (i, 0)),   # x (streamed)
            pl.BlockSpec((1, n_features), lambda i: (0, 0)),    # wconv
            pl.BlockSpec(w1p.shape, lambda i: (0, 0)),          # w1 (padded)
            pl.BlockSpec(b1.shape, lambda i: (0, 0)),
            pl.BlockSpec(w2.shape, lambda i: (0, 0)),
            pl.BlockSpec(b2.shape, lambda i: (0, 0)),
            pl.BlockSpec(w3.shape, lambda i: (0, 0)),
            pl.BlockSpec(b3.shape, lambda i: (0, 0)),
        ],
        out_specs=pl.BlockSpec((1, 1), lambda i: (0, 0)),
        scratch_shapes=[pltpu.VMEM((1, LANE), jnp.float32),   # running k smallest
                        pltpu.VMEM((1, LANE), jnp.float32)],  # running k largest
        compiler_params=pltpu.CompilerParams(
            dimension_semantics=("arbitrary",),   # reduction axis across blocks
            vmem_limit_bytes=vmem_limit),
    )(x, wconv, w1p, b1, w2, b2, w3, b3)
    return out.reshape((1,))


def chowder_reference(x, params, n_extreme=N_EXTREME):
    """Pure-JAX reference mirroring the PyTorch forward (eval mode)."""
    wconv, w1, b1, w2, b2, w3, b3 = params
    scores = (x @ wconv.T)[:, 0]                                     # (n_tiles,)
    s = jnp.sort(scores)
    ext = jnp.concatenate([s[:n_extreme], s[-n_extreme:]])[None, :]  # (1, 2k)
    h1 = jax.nn.sigmoid(ext @ w1 + b1)
    h2 = jax.nn.sigmoid(h1 @ w2 + b2)
    return (h2 @ w3 + b3).reshape((1,))


def init_params(key):
    """Deterministic init mimicking torch.nn.Linear default U[-1/sqrt(fan_in), ...]."""
    ks = jax.random.split(key, 7)

    def u(k, shape, fan_in):
        b = 1.0 / math.sqrt(fan_in)
        return jax.random.uniform(k, shape, jnp.float32, -b, b)

    wconv = u(ks[0], (1, N_FEATURES), N_FEATURES)        # Linear(2048,1,bias=False).weight
    w1 = u(ks[1], (2 * N_EXTREME, MLP1), 2 * N_EXTREME)  # stored (in, out)
    b1 = u(ks[2], (1, MLP1), 2 * N_EXTREME)
    w2 = u(ks[3], (MLP1, MLP2), MLP1)
    b2 = u(ks[4], (1, MLP2), MLP1)
    w3 = u(ks[5], (MLP2, 1), MLP2)
    b3 = u(ks[6], (1, 1), MLP2)
    return (wconv, w1, b1, w2, b2, w3, b3)


if __name__ == "__main__":
    key = jax.random.PRNGKey(0)
    kx, kp = jax.random.split(key)
    params = init_params(kp)

    # f32 bags exercising: single block, one exact full block, ragged tail.
    for n_tiles in (64, 1024, 1100):
        x = jax.random.normal(jax.random.fold_in(kx, n_tiles),
                              (n_tiles, N_FEATURES), jnp.float32)
        out = jax.block_until_ready(chowder_forward(x, params))
        ref = jax.block_until_ready(chowder_reference(x, params))
        assert out.shape == (1,), out.shape
        assert jnp.allclose(out, ref, rtol=1e-4, atol=1e-4), (n_tiles, out, ref)

    # bf16-resident bag (the proper way to get the bandwidth win: the bag is
    # already stored in bf16 in HBM; chowder_forward does not cast it).
    # bf16 score rounding can flip near-ties in the top/bottom-k selection,
    # hence the loose tolerance.
    n_tiles = 2500
    x_bf16 = jax.random.normal(jax.random.fold_in(kx, 7),
                               (n_tiles, N_FEATURES),
                               jnp.float32).astype(jnp.bfloat16)
    out_bf16 = jax.block_until_ready(chowder_forward(x_bf16, params))
    ref = jax.block_until_ready(
        chowder_reference(x_bf16.astype(jnp.float32), params))
    assert out_bf16.shape == (1,)
    assert jnp.allclose(out_bf16, ref, atol=5e-2), (out_bf16, ref)

    print("KERNEL_OK")
</pallas_src>

<mosaic_0001>
module attributes {stable_mosaic.version = 11 : i64} {
  func.func @chowder_kernel(%arg0: i32, %arg1: memref<64x2048xf32, #tpu.memory_space<vmem>>, %arg2: memref<1x2048xf32, #tpu.memory_space<vmem>>, %arg3: memref<256x200xf32, #tpu.memory_space<vmem>>, %arg4: memref<1x200xf32, #tpu.memory_space<vmem>>, %arg5: memref<200x100xf32, #tpu.memory_space<vmem>>, %arg6: memref<1x100xf32, #tpu.memory_space<vmem>>, %arg7: memref<100x1xf32, #tpu.memory_space<vmem>>, %arg8: memref<1x1xf32, #tpu.memory_space<vmem>>, %arg9: memref<1x1xf32, #tpu.memory_space<vmem>>, %arg10: memref<1x128xf32, #tpu.memory_space<vmem>>, %arg11: memref<1x128xf32, #tpu.memory_space<vmem>>) attributes {dimension_semantics = [#tpu.dimension_semantics<arbitrary>], iteration_bounds = array<i64: 1>, scalar_prefetch = 0 : i64, scratch_operands = 2 : i64, tpu.core_type = #tpu.core_type<tc>, window_params = [{transform_indices = @transform_0, window_bounds = array<i64: 64, 2048>}, {pipeline_mode = #tpu.pipeline_mode<synchronous>, transform_indices = @transform_1, window_bounds = array<i64: 1, 2048>}, {pipeline_mode = #tpu.pipeline_mode<synchronous>, transform_indices = @transform_2, window_bounds = array<i64: 256, 200>}, {pipeline_mode = #tpu.pipeline_mode<synchronous>, transform_indices = @transform_3, window_bounds = array<i64: 1, 200>}, {pipeline_mode = #tpu.pipeline_mode<synchronous>, transform_indices = @transform_4, window_bounds = array<i64: 200, 100>}, {pipeline_mode = #tpu.pipeline_mode<synchronous>, transform_indices = @transform_5, window_bounds = array<i64: 1, 100>}, {pipeline_mode = #tpu.pipeline_mode<synchronous>, transform_indices = @transform_6, window_bounds = array<i64: 100, 1>}, {pipeline_mode = #tpu.pipeline_mode<synchronous>, transform_indices = @transform_7, window_bounds = array<i64: 1, 1>}, {pipeline_mode = #tpu.pipeline_mode<synchronous>, transform_indices = @transform_8, window_bounds = array<i64: 1, 1>}]} {
    %c0_i32 = arith.constant 0 : i32
    %0 = arith.cmpi eq, %arg0, %c0_i32 : i32
    %1 = arith.extui %0 : i1 to i32
    %c0_i32_0 = arith.constant 0 : i32
    %2 = arith.cmpi ne, %1, %c0_i32_0 : i32
    scf.if %2 {
      %cst_107 = arith.constant 0x7F800000 : f32
      %371 = vector.broadcast %cst_107 : f32 to vector<1x128xf32>
      %c0_108 = arith.constant 0 : index
      %c0_109 = arith.constant 0 : index
      %372 = vector.load %arg10[%c0_108, %c0_109] : memref<1x128xf32, #tpu.memory_space<vmem>>, vector<1x128xf32>
      tpu.vector_store %arg10[%c0_108, %c0_109], %371 {strides = array<i32>} : memref<1x128xf32, #tpu.memory_space<vmem>>, vector<1x128xf32>,
      %cst_110 = arith.constant 0xFF800000 : f32
      %373 = vector.broadcast %cst_110 : f32 to vector<1x128xf32>
      %c0_111 = arith.constant 0 : index
      %c0_112 = arith.constant 0 : index
      %374 = vector.load %arg11[%c0_111, %c0_112] : memref<1x128xf32, #tpu.memory_space<vmem>>, vector<1x128xf32>
      tpu.vector_store %arg11[%c0_111, %c0_112], %373 {strides = array<i32>} : memref<1x128xf32, #tpu.memory_space<vmem>>, vector<1x128xf32>,
    } else {
    }
    %c0 = arith.constant 0 : index
    %c0_1 = arith.constant 0 : index
    %3 = vector.load %arg2[%c0, %c0_1] : memref<1x2048xf32, #tpu.memory_space<vmem>>, vector<1x2048xf32>
    %c0_2 = arith.constant 0 : index
    %c0_3 = arith.constant 0 : index
    %4 = vector.load %arg1[%c0_2, %c0_3] : memref<64x2048xf32, #tpu.memory_space<vmem>>, vector<64x2048xf32>
    %cst = arith.constant dense<0.000000e+00> : vector<1x64xf32>
    %5 = tpu.matmul %3, %4, %cst {dimension_numbers = #tpu.dot_dimension_numbers<[1], [1], [0], [0], [0, 0, 1, 0], [], []>} : vector<1x2048xf32>, vector<64x2048xf32>, vector<1x64xf32> -> vector<1x64xf32>
    %6 = tpu.iota {dimensions = array<i32: 1>} : vector<1x64xi32>
    %7 = tpu.iota {dimensions = array<i32: 1>} : vector<1x128xi32>
    %cst_4 = arith.constant 0x7F800000 : f32
    %8 = vector.broadcast %cst_4 : f32 to vector<1x128xf32>
    %true = arith.constant true
    %9 = vector.broadcast %true : i1 to vector<1x64xi1>
    %cst_5 = arith.constant 0x7F800000 : f32
    %10 = vector.broadcast %cst_5 : f32 to vector<1x64xf32>
    %11 = arith.select %9, %5, %10 : vector<1x64xi1>, vector<1x64xf32>
    %cst_6 = arith.constant dense<0x7F800000> : vector<1xf32>
    %12 = vector.multi_reduction <minimumf>, %11, %cst_6 [1] : vector<1x64xf32> to vector<1xf32>
    %13 = vector.shape_cast %12 : vector<1xf32> to vector<1x1xf32>
    %14 = vector.broadcast %13 : vector<1x1xf32> to vector<1x64xf32>
    %15 = arith.cmpf oeq, %5, %14 : vector<1x64xf32>
    %16 = arith.andi %9, %15 : vector<1x64xi1>
    %c64_i32 = arith.constant 64 : i32
    %17 = vector.broadcast %c64_i32 : i32 to vector<1x64xi32>
    %18 = arith.select %16, %6, %17 : vector<1x64xi1>, vector<1x64xi32>
    %cst_7 = arith.constant dense<2147483647> : vector<1xi32>
    %19 = vector.multi_reduction <minsi>, %18, %cst_7 [1] : vector<1x64xi32> to vector<1xi32>
    %20 = vector.shape_cast %19 : vector<1xi32> to vector<1x1xi32>
    %21 = vector.broadcast %20 : vector<1x1xi32> to vector<1x64xi32>
    %22 = arith.cmpi ne, %6, %21 : vector<1x64xi32>
    %23 = arith.andi %9, %22 : vector<1x64xi1>
    %c0_i32_8 = arith.constant 0 : i32
    %24 = vector.broadcast %c0_i32_8 : i32 to vector<1x128xi32>
    %25 = arith.cmpi eq, %7, %24 : vector<1x128xi32>
    %26 = vector.shape_cast %13 : vector<1x1xf32> to vector<1x1xf32>
    %27 = vector.broadcast %26 : vector<1x1xf32> to vector<1x128xf32>
    %28 = arith.select %25, %27, %8 : vector<1x128xi1>, vector<1x128xf32>
    %cst_9 = arith.constant 0x7F800000 : f32
    %29 = vector.broadcast %cst_9 : f32 to vector<1x64xf32>
    %30 = arith.select %23, %5, %29 : vector<1x64xi1>, vector<1x64xf32>
    %cst_10 = arith.constant dense<0x7F800000> : vector<1xf32>
    %31 = vector.multi_reduction <minimumf>, %30, %cst_10 [1] : vector<1x64xf32> to vector<1xf32>
    %32 = vector.shape_cast %31 : vector<1xf32> to vector<1x1xf32>
    %33 = vector.broadcast %32 : vector<1x1xf32> to vector<1x64xf32>
    %34 = arith.cmpf oeq, %5, %33 : vector<1x64xf32>
    %35 = arith.andi %23, %34 : vector<1x64xi1>
    %c64_i32_11 = arith.constant 64 : i32
    %36 = vector.broadcast %c64_i32_11 : i32 to vector<1x64xi32>
    %37 = arith.select %35, %6, %36 : vector<1x64xi1>, vector<1x64xi32>
    %cst_12 = arith.constant dense<2147483647> : vector<1xi32>
    %38 = vector.multi_reduction <minsi>, %37, %cst_12 [1] : vector<1x64xi32> to vector<1xi32>
    %39 = vector.shape_cast %38 : vector<1xi32> to vector<1x1xi32>
    %40 = vector.broadcast %39 : vector<1x1xi32> to vector<1x64xi32>
    %41 = arith.cmpi ne, %6, %40 : vector<1x64xi32>
    %42 = arith.andi %23, %41 : vector<1x64xi1>
    %c1_i32 = arith.constant 1 : i32
    %43 = vector.broadcast %c1_i32 : i32 to vector<1x128xi32>
    %44 = arith.cmpi eq, %7, %43 : vector<1x128xi32>
    %45 = vector.shape_cast %32 : vector<1x1xf32> to vector<1x1xf32>
    %46 = vector.broadcast %45 : vector<1x1xf32> to vector<1x128xf32>
    %47 = arith.select %44, %46, %28 : vector<1x128xi1>, vector<1x128xf32>
    %cst_13 = arith.constant 0x7F800000 : f32
    %48 = vector.broadcast %cst_13 : f32 to vector<1x64xf32>
    %49 = arith.select %42, %5, %48 : vector<1x64xi1>, vector<1x64xf32>
    %cst_14 = arith.constant dense<0x7F800000> : vector<1xf32>
    %50 = vector.multi_reduction <minimumf>, %49, %cst_14 [1] : vector<1x64xf32> to vector<1xf32>
    %51 = vector.shape_cast %50 : vector<1xf32> to vector<1x1xf32>
    %52 = vector.broadcast %51 : vector<1x1xf32> to vector<1x64xf32>
    %53 = arith.cmpf oeq, %5, %52 : vector<1x64xf32>
    %54 = arith.andi %42, %53 : vector<1x64xi1>
    %c64_i32_15 = arith.constant 64 : i32
    %55 = vector.broadcast %c64_i32_15 : i32 to vector<1x64xi32>
    %56 = arith.select %54, %6, %55 : vector<1x64xi1>, vector<1x64xi32>
    %cst_16 = arith.constant dense<2147483647> : vector<1xi32>
    %57 = vector.multi_reduction <minsi>, %56, %cst_16 [1] : vector<1x64xi32> to vector<1xi32>
    %58 = vector.shape_cast %57 : vector<1xi32> to vector<1x1xi32>
    %59 = vector.broadcast %58 : vector<1x1xi32> to vector<1x64xi32>
    %60 = arith.cmpi ne, %6, %59 : vector<1x64xi32>
    %61 = arith.andi %42, %60 : vector<1x64xi1>
    %c2_i32 = arith.constant 2 : i32
    %62 = vector.broadcast %c2_i32 : i32 to vector<1x128xi32>
    %63 = arith.cmpi eq, %7, %62 : vector<1x128xi32>
    %64 = vector.shape_cast %51 : vector<1x1xf32> to vector<1x1xf32>
    %65 = vector.broadcast %64 : vector<1x1xf32> to vector<1x128xf32>
    %66 = arith.select %63, %65, %47 : vector<1x128xi1>, vector<1x128xf32>
    %cst_17 = arith.constant 0x7F800000 : f32
    %67 = vector.broadcast %cst_17 : f32 to vector<1x64xf32>
    %68 = arith.select %61, %5, %67 : vector<1x64xi1>, vector<1x64xf32>
    %cst_18 = arith.constant dense<0x7F800000> : vector<1xf32>
    %69 = vector.multi_reduction <minimumf>, %68, %cst_18 [1] : vector<1x64xf32> to vector<1xf32>
    %70 = vector.shape_cast %69 : vector<1xf32> to vector<1x1xf32>
    %71 = vector.broadcast %70 : vector<1x1xf32> to vector<1x64xf32>
    %72 = arith.cmpf oeq, %5, %71 : vector<1x64xf32>
    %73 = arith.andi %61, %72 : vector<1x64xi1>
    %c64_i32_19 = arith.constant 64 : i32
    %74 = vector.broadcast %c64_i32_19 : i32 to vector<1x64xi32>
    %75 = arith.select %73, %6, %74 : vector<1x64xi1>, vector<1x64xi32>
    %cst_20 = arith.constant dense<2147483647> : vector<1xi32>
    %76 = vector.multi_reduction <minsi>, %75, %cst_20 [1] : vector<1x64xi32> to vector<1xi32>
    %77 = vector.shape_cast %76 : vector<1xi32> to vector<1x1xi32>
    %78 = vector.broadcast %77 : vector<1x1xi32> to vector<1x64xi32>
    %79 = arith.cmpi ne, %6, %78 : vector<1x64xi32>
    %80 = arith.andi %61, %79 : vector<1x64xi1>
    %c3_i32 = arith.constant 3 : i32
    %81 = vector.broadcast %c3_i32 : i32 to vector<1x128xi32>
    %82 = arith.cmpi eq, %7, %81 : vector<1x128xi32>
    %83 = vector.shape_cast %70 : vector<1x1xf32> to vector<1x1xf32>
    %84 = vector.broadcast %83 : vector<1x1xf32> to vector<1x128xf32>
    %85 = arith.select %82, %84, %66 : vector<1x128xi1>, vector<1x128xf32>
    %cst_21 = arith.constant 0x7F800000 : f32
    %86 = vector.broadcast %cst_21 : f32 to vector<1x64xf32>
    %87 = arith.select %80, %5, %86 : vector<1x64xi1>, vector<1x64xf32>
    %cst_22 = arith.constant dense<0x7F800000> : vector<1xf32>
    %88 = vector.multi_reduction <minimumf>, %87, %cst_22 [1] : vector<1x64xf32> to vector<1xf32>
    %89 = vector.shape_cast %88 : vector<1xf32> to vector<1x1xf32>
    %c4_i32 = arith.constant 4 : i32
    %90 = vector.broadcast %c4_i32 : i32 to vector<1x128xi32>
    %91 = arith.cmpi eq, %7, %90 : vector<1x128xi32>
    %92 = vector.shape_cast %89 : vector<1x1xf32> to vector<1x1xf32>
    %93 = vector.broadcast %92 : vector<1x1xf32> to vector<1x128xf32>
    %94 = arith.select %91, %93, %85 : vector<1x128xi1>, vector<1x128xf32>
    %95 = tpu.iota {dimensions = array<i32: 1>} : vector<1x64xi32>
    %96 = tpu.iota {dimensions = array<i32: 1>} : vector<1x128xi32>
    %cst_23 = arith.constant 0xFF800000 : f32
    %97 = vector.broadcast %cst_23 : f32 to vector<1x128xf32>
    %true_24 = arith.constant true
    %98 = vector.broadcast %true_24 : i1 to vector<1x64xi1>
    %cst_25 = arith.constant 0xFF800000 : f32
    %99 = vector.broadcast %cst_25 : f32 to vector<1x64xf32>
    %100 = arith.select %98, %5, %99 : vector<1x64xi1>, vector<1x64xf32>
    %cst_26 = arith.constant dense<0xFF800000> : vector<1xf32>
    %101 = vector.multi_reduction <maximumf>, %100, %cst_26 [1] : vector<1x64xf32> to vector<1xf32>
    %102 = vector.shape_cast %101 : vector<1xf32> to vector<1x1xf32>
    %103 = vector.broadcast %102 : vector<1x1xf32> to vector<1x64xf32>
    %104 = arith.cmpf oeq, %5, %103 : vector<1x64xf32>
    %105 = arith.andi %98, %104 : vector<1x64xi1>
    %c64_i32_27 = arith.constant 64 : i32
    %106 = vector.broadcast %c64_i32_27 : i32 to vector<1x64xi32>
    %107 = arith.select %105, %95, %106 : vector<1x64xi1>, vector<1x64xi32>
    %cst_28 = arith.constant dense<2147483647> : vector<1xi32>
    %108 = vector.multi_reduction <minsi>, %107, %cst_28 [1] : vector<1x64xi32> to vector<1xi32>
    %109 = vector.shape_cast %108 : vector<1xi32> to vector<1x1xi32>
    %110 = vector.broadcast %109 : vector<1x1xi32> to vector<1x64xi32>
    %111 = arith.cmpi ne, %95, %110 : vector<1x64xi32>
    %112 = arith.andi %98, %111 : vector<1x64xi1>
    %c0_i32_29 = arith.constant 0 : i32
    %113 = vector.broadcast %c0_i32_29 : i32 to vector<1x128xi32>
    %114 = arith.cmpi eq, %96, %113 : vector<1x128xi32>
    %115 = vector.shape_cast %102 : vector<1x1xf32> to vector<1x1xf32>
    %116 = vector.broadcast %115 : vector<1x1xf32> to vector<1x128xf32>
    %117 = arith.select %114, %116, %97 : vector<1x128xi1>, vector<1x128xf32>
    %cst_30 = arith.constant 0xFF800000 : f32
    %118 = vector.broadcast %cst_30 : f32 to vector<1x64xf32>
    %119 = arith.select %112, %5, %118 : vector<1x64xi1>, vector<1x64xf32>
    %cst_31 = arith.constant dense<0xFF800000> : vector<1xf32>
    %120 = vector.multi_reduction <maximumf>, %119, %cst_31 [1] : vector<1x64xf32> to vector<1xf32>
    %121 = vector.shape_cast %120 : vector<1xf32> to vector<1x1xf32>
    %122 = vector.broadcast %121 : vector<1x1xf32> to vector<1x64xf32>
    %123 = arith.cmpf oeq, %5, %122 : vector<1x64xf32>
    %124 = arith.andi %112, %123 : vector<1x64xi1>
    %c64_i32_32 = arith.constant 64 : i32
    %125 = vector.broadcast %c64_i32_32 : i32 to vector<1x64xi32>
    %126 = arith.select %124, %95, %125 : vector<1x64xi1>, vector<1x64xi32>
    %cst_33 = arith.constant dense<2147483647> : vector<1xi32>
    %127 = vector.multi_reduction <minsi>, %126, %cst_33 [1] : vector<1x64xi32> to vector<1xi32>
    %128 = vector.shape_cast %127 : vector<1xi32> to vector<1x1xi32>
    %129 = vector.broadcast %128 : vector<1x1xi32> to vector<1x64xi32>
    %130 = arith.cmpi ne, %95, %129 : vector<1x64xi32>
    %131 = arith.andi %112, %130 : vector<1x64xi1>
    %c1_i32_34 = arith.constant 1 : i32
    %132 = vector.broadcast %c1_i32_34 : i32 to vector<1x128xi32>
    %133 = arith.cmpi eq, %96, %132 : vector<1x128xi32>
    %134 = vector.shape_cast %121 : vector<1x1xf32> to vector<1x1xf32>
    %135 = vector.broadcast %134 : vector<1x1xf32> to vector<1x128xf32>
    %136 = arith.select %133, %135, %117 : vector<1x128xi1>, vector<1x128xf32>
    %cst_35 = arith.constant 0xFF800000 : f32
    %137 = vector.broadcast %cst_35 : f32 to vector<1x64xf32>
    %138 = arith.select %131, %5, %137 : vector<1x64xi1>, vector<1x64xf32>
    %cst_36 = arith.constant dense<0xFF800000> : vector<1xf32>
    %139 = vector.multi_reduction <maximumf>, %138, %cst_36 [1] : vector<1x64xf32> to vector<1xf32>
    %140 = vector.shape_cast %139 : vector<1xf32> to vector<1x1xf32>
    %141 = vector.broadcast %140 : vector<1x1xf32> to vector<1x64xf32>
    %142 = arith.cmpf oeq, %5, %141 : vector<1x64xf32>
    %143 = arith.andi %131, %142 : vector<1x64xi1>
    %c64_i32_37 = arith.constant 64 : i32
    %144 = vector.broadcast %c64_i32_37 : i32 to vector<1x64xi32>
    %145 = arith.select %143, %95, %144 : vector<1x64xi1>, vector<1x64xi32>
    %cst_38 = arith.constant dense<2147483647> : vector<1xi32>
    %146 = vector.multi_reduction <minsi>, %145, %cst_38 [1] : vector<1x64xi32> to vector<1xi32>
    %147 = vector.shape_cast %146 : vector<1xi32> to vector<1x1xi32>
    %148 = vector.broadcast %147 : vector<1x1xi32> to vector<1x64xi32>
    %149 = arith.cmpi ne, %95, %148 : vector<1x64xi32>
    %150 = arith.andi %131, %149 : vector<1x64xi1>
    %c2_i32_39 = arith.constant 2 : i32
    %151 = vector.broadcast %c2_i32_39 : i32 to vector<1x128xi32>
    %152 = arith.cmpi eq, %96, %151 : vector<1x128xi32>
    %153 = vector.shape_cast %140 : vector<1x1xf32> to vector<1x1xf32>
    %154 = vector.broadcast %153 : vector<1x1xf32> to vector<1x128xf32>
    %155 = arith.select %152, %154, %136 : vector<1x128xi1>, vector<1x128xf32>
    %cst_40 = arith.constant 0xFF800000 : f32
    %156 = vector.broadcast %cst_40 : f32 to vector<1x64xf32>
    %157 = arith.select %150, %5, %156 : vector<1x64xi1>, vector<1x64xf32>
    %cst_41 = arith.constant dense<0xFF800000> : vector<1xf32>
    %158 = vector.multi_reduction <maximumf>, %157, %cst_41 [1] : vector<1x64xf32> to vector<1xf32>
    %159 = vector.shape_cast %158 : vector<1xf32> to vector<1x1xf32>
    %160 = vector.broadcast %159 : vector<1x1xf32> to vector<1x64xf32>
    %161 = arith.cmpf oeq, %5, %160 : vector<1x64xf32>
    %162 = arith.andi %150, %161 : vector<1x64xi1>
    %c64_i32_42 = arith.constant 64 : i32
    %163 = vector.broadcast %c64_i32_42 : i32 to vector<1x64xi32>
    %164 = arith.select %162, %95, %163 : vector<1x64xi1>, vector<1x64xi32>
    %cst_43 = arith.constant dense<2147483647> : vector<1xi32>
    %165 = vector.multi_reduction <minsi>, %164, %cst_43 [1] : vector<1x64xi32> to vector<1xi32>
    %166 = vector.shape_cast %165 : vector<1xi32> to vector<1x1xi32>
    %167 = vector.broadcast %166 : vector<1x1xi32> to vector<1x64xi32>
    %168 = arith.cmpi ne, %95, %167 : vector<1x64xi32>
    %169 = arith.andi %150, %168 : vector<1x64xi1>
    %c3_i32_44 = arith.constant 3 : i32
    %170 = vector.broadcast %c3_i32_44 : i32 to vector<1x128xi32>
    %171 = arith.cmpi eq, %96, %170 : vector<1x128xi32>
    %172 = vector.shape_cast %159 : vector<1x1xf32> to vector<1x1xf32>
    %173 = vector.broadcast %172 : vector<1x1xf32> to vector<1x128xf32>
    %174 = arith.select %171, %173, %155 : vector<1x128xi1>, vector<1x128xf32>
    %cst_45 = arith.constant 0xFF800000 : f32
    %175 = vector.broadcast %cst_45 : f32 to vector<1x64xf32>
    %176 = arith.select %169, %5, %175 : vector<1x64xi1>, vector<1x64xf32>
    %cst_46 = arith.constant dense<0xFF800000> : vector<1xf32>
    %177 = vector.multi_reduction <maximumf>, %176, %cst_46 [1] : vector<1x64xf32> to vector<1xf32>
    %178 = vector.shape_cast %177 : vector<1xf32> to vector<1x1xf32>
    %c4_i32_47 = arith.constant 4 : i32
    %179 = vector.broadcast %c4_i32_47 : i32 to vector<1x128xi32>
    %180 = arith.cmpi eq, %96, %179 : vector<1x128xi32>
    %181 = vector.shape_cast %178 : vector<1x1xf32> to vector<1x1xf32>
    %182 = vector.broadcast %181 : vector<1x1xf32> to vector<1x128xf32>
    %183 = arith.select %180, %182, %174 : vector<1x128xi1>, vector<1x128xf32>
    %c0_48 = arith.constant 0 : index
    %c0_49 = arith.constant 0 : index
    %184 = vector.load %arg10[%c0_48, %c0_49] : memref<1x128xf32, #tpu.memory_space<vmem>>, vector<1x128xf32>
    %185 = tpu.concatenate %184, %94 in 1 : vector<1x128xf32>, vector<1x128xf32> -> vector<1x256xf32>
    %186 = tpu.iota {dimensions = array<i32: 1>} : vector<1x256xi32>
    %187 = tpu.iota {dimensions = array<i32: 1>} : vector<1x128xi32>
    %cst_50 = arith.constant 0x7F800000 : f32
    %188 = vector.broadcast %cst_50 : f32 to vector<1x128xf32>
    %true_51 = arith.constant true
    %189 = vector.broadcast %true_51 : i1 to vector<1x256xi1>
    %cst_52 = arith.constant 0x7F800000 : f32
    %190 = vector.broadcast %cst_52 : f32 to vector<1x256xf32>
    %191 = arith.select %189, %185, %190 : vector<1x256xi1>, vector<1x256xf32>
    %cst_53 = arith.constant dense<0x7F800000> : vector<1xf32>
    %192 = vector.multi_reduction <minimumf>, %191, %cst_53 [1] : vector<1x256xf32> to vector<1xf32>
    %193 = vector.shape_cast %192 : vector<1xf32> to vector<1x1xf32>
    %194 = vector.broadcast %193 : vector<1x1xf32> to vector<1x256xf32>
    %195 = arith.cmpf oeq, %185, %194 : vector<1x256xf32>
    %196 = arith.andi %189, %195 : vector<1x256xi1>
    %c256_i32 = arith.constant 256 : i32
    %197 = vector.broadcast %c256_i32 : i32 to vector<1x256xi32>
    %198 = arith.select %196, %186, %197 : vector<1x256xi1>, vector<1x256xi32>
    %cst_54 = arith.constant dense<2147483647> : vector<1xi32>
    %199 = vector.multi_reduction <minsi>, %198, %cst_54 [1] : vector<1x256xi32> to vector<1xi32>
    %200 = vector.shape_cast %199 : vector<1xi32> to vector<1x1xi32>
    %201 = vector.broadcast %200 : vector<1x1xi32> to vector<1x256xi32>
    %202 = arith.cmpi ne, %186, %201 : vector<1x256xi32>
    %203 = arith.andi %189, %202 : vector<1x256xi1>
    %c0_i32_55 = arith.constant 0 : i32
    %204 = vector.broadcast %c0_i32_55 : i32 to vector<1x128xi32>
    %205 = arith.cmpi eq, %187, %204 : vector<1x128xi32>
    %206 = vector.shape_cast %193 : vector<1x1xf32> to vector<1x1xf32>
    %207 = vector.broadcast %206 : vector<1x1xf32> to vector<1x128xf32>
    %208 = arith.select %205, %207, %188 : vector<1x128xi1>, vector<1x128xf32>
    %cst_56 = arith.constant 0x7F800000 : f32
    %209 = vector.broadcast %cst_56 : f32 to vector<1x256xf32>
    %210 = arith.select %203, %185, %209 : vector<1x256xi1>, vector<1x256xf32>
    %cst_57 = arith.constant dense<0x7F800000> : vector<1xf32>
    %211 = vector.multi_reduction <minimumf>, %210, %cst_57 [1] : vector<1x256xf32> to vector<1xf32>
    %212 = vector.shape_cast %211 : vector<1xf32> to vector<1x1xf32>
    %213 = vector.broadcast %212 : vector<1x1xf32> to vector<1x256xf32>
    %214 = arith.cmpf oeq, %185, %213 : vector<1x256xf32>
    %215 = arith.andi %203, %214 : vector<1x256xi1>
    %c256_i32_58 = arith.constant 256 : i32
    %216 = vector.broadcast %c256_i32_58 : i32 to vector<1x256xi32>
    %217 = arith.select %215, %186, %216 : vector<1x256xi1>, vector<1x256xi32>
    %cst_59 = arith.constant dense<2147483647> : vector<1xi32>
    %218 = vector.multi_reduction <minsi>, %217, %cst_59 [1] : vector<1x256xi32> to vector<1xi32>
    %219 = vector.shape_cast %218 : vector<1xi32> to vector<1x1xi32>
    %220 = vector.broadcast %219 : vector<1x1xi32> to vector<1x256xi32>
    %221 = arith.cmpi ne, %186, %220 : vector<1x256xi32>
    %222 = arith.andi %203, %221 : vector<1x256xi1>
    %c1_i32_60 = arith.constant 1 : i32
    %223 = vector.broadcast %c1_i32_60 : i32 to vector<1x128xi32>
    %224 = arith.cmpi eq, %187, %223 : vector<1x128xi32>
    %225 = vector.shape_cast %212 : vector<1x1xf32> to vector<1x1xf32>
    %226 = vector.broadcast %225 : vector<1x1xf32> to vector<1x128xf32>
    %227 = arith.select %224, %226, %208 : vector<1x128xi1>, vector<1x128xf32>
    %cst_61 = arith.constant 0x7F800000 : f32
    %228 = vector.broadcast %cst_61 : f32 to vector<1x256xf32>
    %229 = arith.select %222, %185, %228 : vector<1x256xi1>, vector<1x256xf32>
    %cst_62 = arith.constant dense<0x7F800000> : vector<1xf32>
    %230 = vector.multi_reduction <minimumf>, %229, %cst_62 [1] : vector<1x256xf32> to vector<1xf32>
    %231 = vector.shape_cast %230 : vector<1xf32> to vector<1x1xf32>
    %232 = vector.broadcast %231 : vector<1x1xf32> to vector<1x256xf32>
    %233 = arith.cmpf oeq, %185, %232 : vector<1x256xf32>
    %234 = arith.andi %222, %233 : vector<1x256xi1>
    %c256_i32_63 = arith.constant 256 : i32
    %235 = vector.broadcast %c256_i32_63 : i32 to vector<1x256xi32>
    %236 = arith.select %234, %186, %235 : vector<1x256xi1>, vector<1x256xi32>
    %cst_64 = arith.constant dense<2147483647> : vector<1xi32>
    %237 = vector.multi_reduction <minsi>, %236, %cst_64 [1] : vector<1x256xi32> to vector<1xi32>
    %238 = vector.shape_cast %237 : vector<1xi32> to vector<1x1xi32>
    %239 = vector.broadcast %238 : vector<1x1xi32> to vector<1x256xi32>
    %240 = arith.cmpi ne, %186, %239 : vector<1x256xi32>
    %241 = arith.andi %222, %240 : vector<1x256xi1>
    %c2_i32_65 = arith.constant 2 : i32
    %242 = vector.broadcast %c2_i32_65 : i32 to vector<1x128xi32>
    %243 = arith.cmpi eq, %187, %242 : vector<1x128xi32>
    %244 = vector.shape_cast %231 : vector<1x1xf32> to vector<1x1xf32>
    %245 = vector.broadcast %244 : vector<1x1xf32> to vector<1x128xf32>
    %246 = arith.select %243, %245, %227 : vector<1x128xi1>, vector<1x128xf32>
    %cst_66 = arith.constant 0x7F800000 : f32
    %247 = vector.broadcast %cst_66 : f32 to vector<1x256xf32>
    %248 = arith.select %241, %185, %247 : vector<1x256xi1>, vector<1x256xf32>
    %cst_67 = arith.constant dense<0x7F800000> : vector<1xf32>
    %249 = vector.multi_reduction <minimumf>, %248, %cst_67 [1] : vector<1x256xf32> to vector<1xf32>
    %250 = vector.shape_cast %249 : vector<1xf32> to vector<1x1xf32>
    %251 = vector.broadcast %250 : vector<1x1xf32> to vector<1x256xf32>
    %252 = arith.cmpf oeq, %185, %251 : vector<1x256xf32>
    %253 = arith.andi %241, %252 : vector<1x256xi1>
    %c256_i32_68 = arith.constant 256 : i32
    %254 = vector.broadcast %c256_i32_68 : i32 to vector<1x256xi32>
    %255 = arith.select %253, %186, %254 : vector<1x256xi1>, vector<1x256xi32>
    %cst_69 = arith.constant dense<2147483647> : vector<1xi32>
    %256 = vector.multi_reduction <minsi>, %255, %cst_69 [1] : vector<1x256xi32> to vector<1xi32>
    %257 = vector.shape_cast %256 : vector<1xi32> to vector<1x1xi32>
    %258 = vector.broadcast %257 : vector<1x1xi32> to vector<1x256xi32>
    %259 = arith.cmpi ne, %186, %258 : vector<1x256xi32>
    %260 = arith.andi %241, %259 : vector<1x256xi1>
    %c3_i32_70 = arith.constant 3 : i32
    %261 = vector.broadcast %c3_i32_70 : i32 to vector<1x128xi32>
    %262 = arith.cmpi eq, %187, %261 : vector<1x128xi32>
    %263 = vector.shape_cast %250 : vector<1x1xf32> to vector<1x1xf32>
    %264 = vector.broadcast %263 : vector<1x1xf32> to vector<1x128xf32>
    %265 = arith.select %262, %264, %246 : vector<1x128xi1>, vector<1x128xf32>
    %cst_71 = arith.constant 0x7F800000 : f32
    %266 = vector.broadcast %cst_71 : f32 to vector<1x256xf32>
    %267 = arith.select %260, %185, %266 : vector<1x256xi1>, vector<1x256xf32>
    %cst_72 = arith.constant dense<0x7F800000> : vector<1xf32>
    %268 = vector.multi_reduction <minimumf>, %267, %cst_72 [1] : vector<1x256xf32> to vector<1xf32>
    %269 = vector.shape_cast %268 : vector<1xf32> to vector<1x1xf32>
    %c4_i32_73 = arith.constant 4 : i32
    %270 = vector.broadcast %c4_i32_73 : i32 to vector<1x128xi32>
    %271 = arith.cmpi eq, %187, %270 : vector<1x128xi32>
    %272 = vector.shape_cast %269 : vector<1x1xf32> to vector<1x1xf32>
    %273 = vector.broadcast %272 : vector<1x1xf32> to vector<1x128xf32>
    %274 = arith.select %271, %273, %265 : vector<1x128xi1>, vector<1x128xf32>
    %c0_74 = arith.constant 0 : index
    %c0_75 = arith.constant 0 : index
    %275 = vector.load %arg10[%c0_74, %c0_75] : memref<1x128xf32, #tpu.memory_space<vmem>>, vector<1x128xf32>
    tpu.vector_store %arg10[%c0_74, %c0_75], %274 {strides = array<i32>} : memref<1x128xf32, #tpu.memory_space<vmem>>, vector<1x128xf32>,
    %c0_76 = arith.constant 0 : index
    %c0_77 = arith.constant 0 : index
    %276 = vector.load %arg11[%c0_76, %c0_77] : memref<1x128xf32, #tpu.memory_space<vmem>>, vector<1x128xf32>
    %277 = tpu.concatenate %276, %183 in 1 : vector<1x128xf32>, vector<1x128xf32> -> vector<1x256xf32>
    %278 = tpu.iota {dimensions = array<i32: 1>} : vector<1x256xi32>
    %279 = tpu.iota {dimensions = array<i32: 1>} : vector<1x128xi32>
    %cst_78 = arith.constant 0xFF800000 : f32
    %280 = vector.broadcast %cst_78 : f32 to vector<1x128xf32>
    %true_79 = arith.constant true
    %281 = vector.broadcast %true_79 : i1 to vector<1x256xi1>
    %cst_80 = arith.constant 0xFF800000 : f32
    %282 = vector.broadcast %cst_80 : f32 to vector<1x256xf32>
    %283 = arith.select %281, %277, %282 : vector<1x256xi1>, vector<1x256xf32>
    %cst_81 = arith.constant dense<0xFF800000> : vector<1xf32>
    %284 = vector.multi_reduction <maximumf>, %283, %cst_81 [1] : vector<1x256xf32> to vector<1xf32>
    %285 = vector.shape_cast %284 : vector<1xf32> to vector<1x1xf32>
    %286 = vector.broadcast %285 : vector<1x1xf32> to vector<1x256xf32>
    %287 = arith.cmpf oeq, %277, %286 : vector<1x256xf32>
    %288 = arith.andi %281, %287 : vector<1x256xi1>
    %c256_i32_82 = arith.constant 256 : i32
    %289 = vector.broadcast %c256_i32_82 : i32 to vector<1x256xi32>
    %290 = arith.select %288, %278, %289 : vector<1x256xi1>, vector<1x256xi32>
    %cst_83 = arith.constant dense<2147483647> : vector<1xi32>
    %291 = vector.multi_reduction <minsi>, %290, %cst_83 [1] : vector<1x256xi32> to vector<1xi32>
    %292 = vector.shape_cast %291 : vector<1xi32> to vector<1x1xi32>
    %293 = vector.broadcast %292 : vector<1x1xi32> to vector<1x256xi32>
    %294 = arith.cmpi ne, %278, %293 : vector<1x256xi32>
    %295 = arith.andi %281, %294 : vector<1x256xi1>
    %c0_i32_84 = arith.constant 0 : i32
    %296 = vector.broadcast %c0_i32_84 : i32 to vector<1x128xi32>
    %297 = arith.cmpi eq, %279, %296 : vector<1x128xi32>
    %298 = vector.shape_cast %285 : vector<1x1xf32> to vector<1x1xf32>
    %299 = vector.broadcast %298 : vector<1x1xf32> to vector<1x128xf32>
    %300 = arith.select %297, %299, %280 : vector<1x128xi1>, vector<1x128xf32>
    %cst_85 = arith.constant 0xFF800000 : f32
    %301 = vector.broadcast %cst_85 : f32 to vector<1x256xf32>
    %302 = arith.select %295, %277, %301 : vector<1x256xi1>, vector<1x256xf32>
    %cst_86 = arith.constant dense<0xFF800000> : vector<1xf32>
    %303 = vector.multi_reduction <maximumf>, %302, %cst_86 [1] : vector<1x256xf32> to vector<1xf32>
    %304 = vector.shape_cast %303 : vector<1xf32> to vector<1x1xf32>
    %305 = vector.broadcast %304 : vector<1x1xf32> to vector<1x256xf32>
    %306 = arith.cmpf oeq, %277, %305 : vector<1x256xf32>
    %307 = arith.andi %295, %306 : vector<1x256xi1>
    %c256_i32_87 = arith.constant 256 : i32
    %308 = vector.broadcast %c256_i32_87 : i32 to vector<1x256xi32>
    %309 = arith.select %307, %278, %308 : vector<1x256xi1>, vector<1x256xi32>
    %cst_88 = arith.constant dense<2147483647> : vector<1xi32>
    %310 = vector.multi_reduction <minsi>, %309, %cst_88 [1] : vector<1x256xi32> to vector<1xi32>
    %311 = vector.shape_cast %310 : vector<1xi32> to vector<1x1xi32>
    %312 = vector.broadcast %311 : vector<1x1xi32> to vector<1x256xi32>
    %313 = arith.cmpi ne, %278, %312 : vector<1x256xi32>
    %314 = arith.andi %295, %313 : vector<1x256xi1>
    %c1_i32_89 = arith.constant 1 : i32
    %315 = vector.broadcast %c1_i32_89 : i32 to vector<1x128xi32>
    %316 = arith.cmpi eq, %279, %315 : vector<1x128xi32>
    %317 = vector.shape_cast %304 : vector<1x1xf32> to vector<1x1xf32>
    %318 = vector.broadcast %317 : vector<1x1xf32> to vector<1x128xf32>
    %319 = arith.select %316, %318, %300 : vector<1x128xi1>, vector<1x128xf32>
    %cst_90 = arith.constant 0xFF800000 : f32
    %320 = vector.broadcast %cst_90 : f32 to vector<1x256xf32>
    %321 = arith.select %314, %277, %320 : vector<1x256xi1>, vector<1x256xf32>
    %cst_91 = arith.constant dense<0xFF800000> : vector<1xf32>
    %322 = vector.multi_reduction <maximumf>, %321, %cst_91 [1] : vector<1x256xf32> to vector<1xf32>
    %323 = vector.shape_cast %322 : vector<1xf32> to vector<1x1xf32>
    %324 = vector.broadcast %323 : vector<1x1xf32> to vector<1x256xf32>
    %325 = arith.cmpf oeq, %277, %324 : vector<1x256xf32>
    %326 = arith.andi %314, %325 : vector<1x256xi1>
    %c256_i32_92 = arith.constant 256 : i32
    %327 = vector.broadcast %c256_i32_92 : i32 to vector<1x256xi32>
    %328 = arith.select %326, %278, %327 : vector<1x256xi1>, vector<1x256xi32>
    %cst_93 = arith.constant dense<2147483647> : vector<1xi32>
    %329 = vector.multi_reduction <minsi>, %328, %cst_93 [1] : vector<1x256xi32> to vector<1xi32>
    %330 = vector.shape_cast %329 : vector<1xi32> to vector<1x1xi32>
    %331 = vector.broadcast %330 : vector<1x1xi32> to vector<1x256xi32>
    %332 = arith.cmpi ne, %278, %331 : vector<1x256xi32>
    %333 = arith.andi %314, %332 : vector<1x256xi1>
    %c2_i32_94 = arith.constant 2 : i32
    %334 = vector.broadcast %c2_i32_94 : i32 to vector<1x128xi32>
    %335 = arith.cmpi eq, %279, %334 : vector<1x128xi32>
    %336 = vector.shape_cast %323 : vector<1x1xf32> to vector<1x1xf32>
    %337 = vector.broadcast %336 : vector<1x1xf32> to vector<1x128xf32>
    %338 = arith.select %335, %337, %319 : vector<1x128xi1>, vector<1x128xf32>
    %cst_95 = arith.constant 0xFF800000 : f32
    %339 = vector.broadcast %cst_95 : f32 to vector<1x256xf32>
    %340 = arith.select %333, %277, %339 : vector<1x256xi1>, vector<1x256xf32>
    %cst_96 = arith.constant dense<0xFF800000> : vector<1xf32>
    %341 = vector.multi_reduction <maximumf>, %340, %cst_96 [1] : vector<1x256xf32> to vector<1xf32>
    %342 = vector.shape_cast %341 : vector<1xf32> to vector<1x1xf32>
    %343 = vector.broadcast %342 : vector<1x1xf32> to vector<1x256xf32>
    %344 = arith.cmpf oeq, %277, %343 : vector<1x256xf32>
    %345 = arith.andi %333, %344 : vector<1x256xi1>
    %c256_i32_97 = arith.constant 256 : i32
    %346 = vector.broadcast %c256_i32_97 : i32 to vector<1x256xi32>
    %347 = arith.select %345, %278, %346 : vector<1x256xi1>, vector<1x256xi32>
    %cst_98 = arith.constant dense<2147483647> : vector<1xi32>
    %348 = vector.multi_reduction <minsi>, %347, %cst_98 [1] : vector<1x256xi32> to vector<1xi32>
    %349 = vector.shape_cast %348 : vector<1xi32> to vector<1x1xi32>
    %350 = vector.broadcast %349 : vector<1x1xi32> to vector<1x256xi32>
    %351 = arith.cmpi ne, %278, %350 : vector<1x256xi32>
    %352 = arith.andi %333, %351 : vector<1x256xi1>
    %c3_i32_99 = arith.constant 3 : i32
    %353 = vector.broadcast %c3_i32_99 : i32 to vector<1x128xi32>
    %354 = arith.cmpi eq, %279, %353 : vector<1x128xi32>
    %355 = vector.shape_cast %342 : vector<1x1xf32> to vector<1x1xf32>
    %356 = vector.broadcast %355 : vector<1x1xf32> to vector<1x128xf32>
    %357 = arith.select %354, %356, %338 : vector<1x128xi1>, vector<1x128xf32>
    %cst_100 = arith.constant 0xFF800000 : f32
    %358 = vector.broadcast %cst_100 : f32 to vector<1x256xf32>
    %359 = arith.select %352, %277, %358 : vector<1x256xi1>, vector<1x256xf32>
    %cst_101 = arith.constant dense<0xFF800000> : vector<1xf32>
    %360 = vector.multi_reduction <maximumf>, %359, %cst_101 [1] : vector<1x256xf32> to vector<1xf32>
    %361 = vector.shape_cast %360 : vector<1xf32> to vector<1x1xf32>
    %c4_i32_102 = arith.constant 4 : i32
    %362 = vector.broadcast %c4_i32_102 : i32 to vector<1x128xi32>
    %363 = arith.cmpi eq, %279, %362 : vector<1x128xi32>
    %364 = vector.shape_cast %361 : vector<1x1xf32> to vector<1x1xf32>
    %365 = vector.broadcast %364 : vector<1x1xf32> to vector<1x128xf32>
    %366 = arith.select %363, %365, %357 : vector<1x128xi1>, vector<1x128xf32>
    %c0_103 = arith.constant 0 : index
    %c0_104 = arith.constant 0 : index
    %367 = vector.load %arg11[%c0_103, %c0_104] : memref<1x128xf32, #tpu.memory_space<vmem>>, vector<1x128xf32>
    tpu.vector_store %arg11[%c0_103, %c0_104], %366 {strides = array<i32>} : memref<1x128xf32, #tpu.memory_space<vmem>>, vector<1x128xf32>,
    %c0_i32_105 = arith.constant 0 : i32
    %368 = arith.cmpi eq, %arg0, %c0_i32_105 : i32
    %369 = arith.extui %368 : i1 to i32
    %c0_i32_106 = arith.constant 0 : i32
    %370 = arith.cmpi ne, %369, %c0_i32_106 : i32
    scf.if %370 {
      %371 = tpu.iota {dimensions = array<i32: 1>} : vector<1x128xi32>
      %c5_i32 = arith.constant 5 : i32
      %372 = vector.broadcast %c5_i32 : i32 to vector<1x128xi32>
      %373 = arith.cmpi slt, %371, %372 : vector<1x128xi32>
      %c0_107 = arith.constant 0 : index
      %c0_108 = arith.constant 0 : index
      %374 = vector.load %arg10[%c0_107, %c0_108] : memref<1x128xf32, #tpu.memory_space<vmem>>, vector<1x128xf32>
      %cst_109 = arith.constant 0.000000e+00 : f32
      %375 = vector.broadcast %cst_109 : f32 to vector<1x128xf32>
      %376 = arith.select %373, %374, %375 : vector<1x128xi1>, vector<1x128xf32>
      %c0_110 = arith.constant 0 : index
      %c0_111 = arith.constant 0 : index
      %377 = vector.load %arg11[%c0_110, %c0_111] : memref<1x128xf32, #tpu.memory_space<vmem>>, vector<1x128xf32>
      %cst_112 = arith.constant 0.000000e+00 : f32
      %378 = vector.broadcast %cst_112 : f32 to vector<1x128xf32>
      %379 = arith.select %373, %377, %378 : vector<1x128xi1>, vector<1x128xf32>
      %380 = tpu.concatenate %376, %379 in 1 : vector<1x128xf32>, vector<1x128xf32> -> vector<1x256xf32>
      %c0_113 = arith.constant 0 : index
      %c0_114 = arith.constant 0 : index
      %381 = vector.load %arg3[%c0_113, %c0_114] : memref<256x200xf32, #tpu.memory_space<vmem>>, vector<256x200xf32>
      %cst_115 = arith.constant dense<0.000000e+00> : vector<1x200xf32>
      %382 = tpu.matmul %380, %381, %cst_115 {dimension_numbers = #tpu.dot_dimension_numbers<[1], [0], [0], [1], [0, 0, 1, 1], [], []>} : vector<1x256xf32>, vector<256x200xf32>, vector<1x200xf32> -> vector<1x200xf32>
      %c0_116 = arith.constant 0 : index
      %c0_117 = arith.constant 0 : index
      %383 = vector.load %arg4[%c0_116, %c0_117] : memref<1x200xf32, #tpu.memory_space<vmem>>, vector<1x200xf32>
      %384 = arith.addf %382, %383 : vector<1x200xf32>
      %385 = arith.negf %384 : vector<1x200xf32>
      %386 = math.exp %385 : vector<1x200xf32>
      %cst_118 = arith.constant 1.000000e+00 : f32
      %387 = vector.broadcast %cst_118 : f32 to vector<1x200xf32>
      %388 = arith.addf %387, %386 : vector<1x200xf32>
      %389 = arith.divf %387, %388 : vector<1x200xf32>
      %c0_119 = arith.constant 0 : index
      %c0_120 = arith.constant 0 : index
      %390 = vector.load %arg5[%c0_119, %c0_120] : memref<200x100xf32, #tpu.memory_space<vmem>>, vector<200x100xf32>
      %cst_121 = arith.constant dense<0.000000e+00> : vector<1x100xf32>
      %391 = tpu.matmul %389, %390, %cst_121 {dimension_numbers = #tpu.dot_dimension_numbers<[1], [0], [0], [1], [0, 0, 1, 1], [], []>} : vector<1x200xf32>, vector<200x100xf32>, vector<1x100xf32> -> vector<1x100xf32>
      %c0_122 = arith.constant 0 : index
      %c0_123 = arith.constant 0 : index
      %392 = vector.load %arg6[%c0_122, %c0_123] : memref<1x100xf32, #tpu.memory_space<vmem>>, vector<1x100xf32>
      %393 = arith.addf %391, %392 : vector<1x100xf32>
      %394 = arith.negf %393 : vector<1x100xf32>
      %395 = math.exp %394 : vector<1x100xf32>
      %cst_124 = arith.constant 1.000000e+00 : f32
      %396 = vector.broadcast %cst_124 : f32 to vector<1x100xf32>
      %397 = arith.addf %396, %395 : vector<1x100xf32>
      %398 = arith.divf %396, %397 : vector<1x100xf32>
      %c0_125 = arith.constant 0 : index
      %c0_126 = arith.constant 0 : index
      %399 = vector.load %arg7[%c0_125, %c0_126] : memref<100x1xf32, #tpu.memory_space<vmem>>, vector<100x1xf32>
      %cst_127 = arith.constant dense<0.000000e+00> : vector<1x1xf32>
      %400 = tpu.matmul %398, %399, %cst_127 {dimension_numbers = #tpu.dot_dimension_numbers<[1], [0], [0], [1], [0, 0, 1, 1], [], []>} : vector<1x100xf32>, vector<100x1xf32>, vector<1x1xf32> -> vector<1x1xf32>
      %c0_128 = arith.constant 0 : index
      %c0_129 = arith.constant 0 : index
      %401 = vector.load %arg8[%c0_128, %c0_129] : memref<1x1xf32, #tpu.memory_space<vmem>>, vector<1x1xf32>
      %402 = arith.addf %400, %401 : vector<1x1xf32>
      %c0_130 = arith.constant 0 : index
      %c0_131 = arith.constant 0 : index
      %403 = vector.load %arg9[%c0_130, %c0_131] : memref<1x1xf32, #tpu.memory_space<vmem>>, vector<1x1xf32>
      tpu.vector_store %arg9[%c0_130, %c0_131], %402 {strides = array<i32>} : memref<1x1xf32, #tpu.memory_space<vmem>>, vector<1x1xf32>,
    } else {
    }
    return
  }
  func.func @transform_0(%arg0: i32) -> (i32, i32) {
    %c0_i32 = arith.constant 0 : i32
    %c0_i32_0 = arith.constant 0 : i32
    return %arg0, %c0_i32 : i32, i32
  }
  func.func @transform_1(%arg0: i32) -> (i32, i32) {
    %c0_i32 = arith.constant 0 : i32
    %c0_i32_0 = arith.constant 0 : i32
    %c0_i32_1 = arith.constant 0 : i32
    return %c0_i32, %c0_i32_0 : i32, i32
  }
  func.func @transform_2(%arg0: i32) -> (i32, i32) {
    %c0_i32 = arith.constant 0 : i32
    %c0_i32_0 = arith.constant 0 : i32
    %c0_i32_1 = arith.constant 0 : i32
    return %c0_i32, %c0_i32_0 : i32, i32
  }
  func.func @transform_3(%arg0: i32) -> (i32, i32) {
    %c0_i32 = arith.constant 0 : i32
    %c0_i32_0 = arith.constant 0 : i32
    %c0_i32_1 = arith.constant 0 : i32
    return %c0_i32, %c0_i32_0 : i32, i32
  }
  func.func @transform_4(%arg0: i32) -> (i32, i32) {
    %c0_i32 = arith.constant 0 : i32
    %c0_i32_0 = arith.constant 0 : i32
    %c0_i32_1 = arith.constant 0 : i32
    return %c0_i32, %c0_i32_0 : i32, i32
  }
  func.func @transform_5(%arg0: i32) -> (i32, i32) {
    %c0_i32 = arith.constant 0 : i32
    %c0_i32_0 = arith.constant 0 : i32
    %c0_i32_1 = arith.constant 0 : i32
    return %c0_i32, %c0_i32_0 : i32, i32
  }
  func.func @transform_6(%arg0: i32) -> (i32, i32) {
    %c0_i32 = arith.constant 0 : i32
    %c0_i32_0 = arith.constant 0 : i32
    %c0_i32_1 = arith.constant 0 : i32
    return %c0_i32, %c0_i32_0 : i32, i32
  }
  func.func @transform_7(%arg0: i32) -> (i32, i32) {
    %c0_i32 = arith.constant 0 : i32
    %c0_i32_0 = arith.constant 0 : i32
    %c0_i32_1 = arith.constant 0 : i32
    return %c0_i32, %c0_i32_0 : i32, i32
  }
  func.func @transform_8(%arg0: i32) -> (i32, i32) {
    %c0_i32 = arith.constant 0 : i32
    %c0_i32_0 = arith.constant 0 : i32
    %c0_i32_1 = arith.constant 0 : i32
    return %c0_i32, %c0_i32_0 : i32, i32
  }
}

</mosaic_0001>

<llo_original>
// kernel: tpu_custom_call.1
$region0: #{tpu_custom_call.1}
  #allocation0 [shape = 'u32[]', space=smem, size = 0x4, offset = 0x4, fixed_abs, tag = 'smem constant byte address 0x4 - core index']
  #allocation1 [shape = 'u32[144,128]{1,0:T(1,128)}', space=vmem, size = 0x12000, scoped, tag = 'internal scratch']
  #allocation2 [shape = 'f32[1,128]{1,0:T(1,128)}', space=vmem, size = 0x200, scoped, tag = 'scratch operand']
  #allocation3 [shape = 'f32[1,128]{1,0:T(1,128)}', space=vmem, size = 0x200, scoped, tag = 'scratch operand']
  #allocation4 [shape = 'f32[1,1]{1,0:T(1,128)S(1)}', space=vmem, size = 0x200, scoped, tag = 'scoped memory for tpu_custom_call.1']
  %s0 = inlined_call_operand.hbm [shape: f32[64,2048], index: 0, kind: input, shape index: {}]
  %s1 = inlined_call_operand.vmem [shape: f32[1,2048], index: 1, kind: input, shape index: {}]
  %s2 = inlined_call_operand.vmem [shape: f32[256,200], index: 2, kind: input, shape index: {}]
  %s3 = inlined_call_operand.vmem [shape: f32[1,200], index: 3, kind: input, shape index: {}]
  %s4 = inlined_call_operand.vmem [shape: f32[200,100], index: 4, kind: input, shape index: {}]
  %s5 = inlined_call_operand.vmem [shape: f32[1,100], index: 5, kind: input, shape index: {}]
  %s6 = inlined_call_operand.vmem [shape: f32[100,1], index: 6, kind: input, shape index: {}]
  %s7 = inlined_call_operand.<no memory space> [shape: f32[1,1], index: 7, kind: input, shape index: {}]
  %s8 = inlined_call_operand.hbm [shape: f32[1,1], index: 8, kind: output, shape index: {}]
  %s9 = sld [smem:[#allocation0]]
  $region54: #{tpu_custom_call.1} parent=0
    _
  %s11 = ssub.s32 1, %s9
  %s12 = scalar_select 0, %s11, %s9
  %v13 = vstv %s7
  %14 = vst [vmem:[#allocation4] sm:$0x1] %v13
  $region1: #{tpu_custom_call.1} parent=0
    #allocation5 [shape = 'u8[524288]{0}', space=vmem, size = 0x80000, scoped, tag = 'input window, operand 0, single buffered']
    #allocation6 [shape = 's32[1]{0}', space=sflag, size = 0x4, scoped, tag = 'scoped memory for tpu_custom_call.1']
    #allocation7 [shape = 's32[1]{0}', space=sflag, size = 0x4, scoped, tag = 'scoped memory for tpu_custom_call.1']
    #allocation8 [shape = 'u8[512]{0}', space=vmem, size = 0x400, scoped, tag = 'output window, operand 0, single buffered']
    %15 = vsyncpa [#allocation6], 0
    %16 = vsyncpa [#allocation7], 0
    // Predicated region
    $region2: #{tpu_custom_call.1} parent=1 // pred_check
      _
    $region3: #{tpu_custom_call.1} parent=1 // pred_check_branch
      %18 = sbr.rel (0) target = $region5
    $region4: #{tpu_custom_call.1} parent=1 // pred_region
      %s20 = ssub.s32 16384, 16384
      %21 = vsyncadd [#allocation6], %s20
      %s22 = sshll.u32 [#allocation5], 4
      %s23 = int_to_ptr.vmem [resolvable:$true] %s22
      %28 = dma.hbm_to_vmem [thread:$0]  %s0, 16384, %s23, [#allocation6], 2048, 2048, 128
    $region5: #{tpu_custom_call.1} parent=1 // pred_fallthru
      _
    // Predicated region
    $region6: #{tpu_custom_call.1} parent=1 // pred_check
      _
    $region7: #{tpu_custom_call.1} parent=1 // pred_check_branch
      %30 = sbr.rel (0) target = $region9
    $region8: #{tpu_custom_call.1} parent=1 // pred_region
      _
    $region9: #{tpu_custom_call.1} parent=1 // pred_fallthru
      _
    // Predicated region
    $region10: #{tpu_custom_call.1} parent=1 // pred_check
      _
    $region11: #{tpu_custom_call.1} parent=1 // pred_check_branch
      %32 = sbr.rel (0) target = $region13
    $region12: #{tpu_custom_call.1} parent=1 // pred_region
      _
    $region13: #{tpu_custom_call.1} parent=1 // pred_fallthru
      _
    // Predicated region
    $region14: #{tpu_custom_call.1} parent=1 // pred_check
      _
    $region15: #{tpu_custom_call.1} parent=1 // pred_check_branch
      %34 = sbr.rel (0) target = $region17
    $region16: #{tpu_custom_call.1} parent=1 // pred_region
      _
    $region17: #{tpu_custom_call.1} parent=1 // pred_fallthru
      _
    // Predicated region
    $region18: #{tpu_custom_call.1} parent=1 // pred_check
      _
    $region19: #{tpu_custom_call.1} parent=1 // pred_check_branch
      %36 = sbr.rel (0) target = $region21
    $region20: #{tpu_custom_call.1} parent=1 // pred_region
      _
    $region21: #{tpu_custom_call.1} parent=1 // pred_fallthru
      _
    // Predicated region
    $region22: #{tpu_custom_call.1} parent=1 // pred_check
      _
    $region23: #{tpu_custom_call.1} parent=1 // pred_check_branch
      %38 = sbr.rel (0) target = $region25
    $region24: #{tpu_custom_call.1} parent=1 // pred_region
      _
    $region25: #{tpu_custom_call.1} parent=1 // pred_fallthru
      _
    // Predicated region
    $region26: #{tpu_custom_call.1} parent=1 // pred_check
      _
    $region27: #{tpu_custom_call.1} parent=1 // pred_check_branch
      %40 = sbr.rel (0) target = $region29
    $region28: #{tpu_custom_call.1} parent=1 // pred_region
      _
    $region29: #{tpu_custom_call.1} parent=1 // pred_fallthru
      _
    // Predicated region
    $region30: #{tpu_custom_call.1} parent=1 // pred_check
      _
    $region31: #{tpu_custom_call.1} parent=1 // pred_check_branch
      %42 = sbr.rel (0) target = $region33
    $region32: #{tpu_custom_call.1} parent=1 // pred_region
      _
    $region33: #{tpu_custom_call.1} parent=1 // pred_fallthru
      _
    // Predicated region
    $region34: #{tpu_custom_call.1} parent=1 // pred_check
      _
    $region35: #{tpu_custom_call.1} parent=1 // pred_check_branch
      %44 = sbr.rel (0) target = $region37
    $region36: #{tpu_custom_call.1} parent=1 // pred_region
      %45 = dma.done [#allocation6], 16384
    $region37: #{tpu_custom_call.1} parent=1 // pred_fallthru
      _
    %p46 = scmp.eq.s32.totalorder 0, 0
    // Predicated region
    $region38: #{tpu_custom_call.1} parent=1 // pred_check
      %p47 = pneg %p46
    $region39: #{tpu_custom_call.1} parent=1 // pred_check_branch
      %49 = sbr.rel (%p47) target = $region41
    $region40: #{tpu_custom_call.1} parent=1 // pred_region
      %50 = vst [vmem:[#allocation2] sm:$0x1] inf
      %51 = vst [vmem:[#allocation3] sm:$0x1] -inf
    $region41: #{tpu_custom_call.1} parent=1 // pred_fallthru
      _
    %v52 = vld [vmem:[%s1] sm:$0xff]
    %v53 = vld [vmem:[%s1 + $0x8] sm:$0xff]
    %v54 = vld [vmem:[#allocation5] sm:$0xff]
    %v55 = vld [vmem:[#allocation5 + $0x8] sm:$0xff]
    %v56 = vld [vmem:[#allocation5 + $0x10] sm:$0xff]
    %v57 = vld [vmem:[#allocation5 + $0x18] sm:$0xff]
    %v58 = vld [vmem:[#allocation5 + $0x20] sm:$0xff]
    %v59 = vld [vmem:[#allocation5 + $0x28] sm:$0xff]
    %v60 = vld [vmem:[#allocation5 + $0x30] sm:$0xff]
    %v61 = vld [vmem:[#allocation5 + $0x38] sm:$0xff]
    %v62 = vld [vmem:[#allocation5 + $0x40] sm:$0xff]
    %v63 = vld [vmem:[#allocation5 + $0x48] sm:$0xff]
    %v64 = vld [vmem:[#allocation5 + $0x50] sm:$0xff]
    %v65 = vld [vmem:[#allocation5 + $0x58] sm:$0xff]
    %v66 = vld [vmem:[#allocation5 + $0x60] sm:$0xff]
    %v67 = vld [vmem:[#allocation5 + $0x68] sm:$0xff]
    %v68 = vld [vmem:[#allocation5 + $0x70] sm:$0xff]
    %v69 = vld [vmem:[#allocation5 + $0x78] sm:$0xff]
    %v70 = vld [vmem:[#allocation5 + $0x80] sm:$0xff]
    %v71 = vld [vmem:[#allocation5 + $0x88] sm:$0xff]
    %v72 = vld [vmem:[#allocation5 + $0x90] sm:$0xff]
    %v73 = vld [vmem:[#allocation5 + $0x98] sm:$0xff]
    %v74 = vld [vmem:[#allocation5 + $0xa0] sm:$0xff]
    %v75 = vld [vmem:[#allocation5 + $0xa8] sm:$0xff]
    %v76 = vld [vmem:[#allocation5 + $0xb0] sm:$0xff]
    %v77 = vld [vmem:[#allocation5 + $0xb8] sm:$0xff]
    %v78 = vld [vmem:[#allocation5 + $0xc0] sm:$0xff]
    %v79 = vld [vmem:[#allocation5 + $0xc8] sm:$0xff]
    %v80 = vld [vmem:[#allocation5 + $0xd0] sm:$0xff]
    %v81 = vld [vmem:[#allocation5 + $0xd8] sm:$0xff]
    %v82 = vld [vmem:[#allocation5 + $0xe0] sm:$0xff]
    %v83 = vld [vmem:[#allocation5 + $0xe8] sm:$0xff]
    %v84 = vld [vmem:[#allocation5 + $0xf0] sm:$0xff]
    %v85 = vld [vmem:[#allocation5 + $0xf8] sm:$0xff]
    %v86 = vld [vmem:[#allocation5 + $0x100] sm:$0xff]
    %v87 = vld [vmem:[#allocation5 + $0x108] sm:$0xff]
    %v88 = vld [vmem:[#allocation5 + $0x110] sm:$0xff]
    %v89 = vld [vmem:[#allocation5 + $0x118] sm:$0xff]
    %v90 = vld [vmem:[#allocation5 + $0x120] sm:$0xff]
    %v91 = vld [vmem:[#allocation5 + $0x128] sm:$0xff]
    %v92 = vld [vmem:[#allocation5 + $0x130] sm:$0xff]
    %v93 = vld [vmem:[#allocation5 + $0x138] sm:$0xff]
    %v94 = vld [vmem:[#allocation5 + $0x140] sm:$0xff]
    %v95 = vld [vmem:[#allocation5 + $0x148] sm:$0xff]
    %v96 = vld [vmem:[#allocation5 + $0x150] sm:$0xff]
    %v97 = vld [vmem:[#allocation5 + $0x158] sm:$0xff]
    %v98 = vld [vmem:[#allocation5 + $0x160] sm:$0xff]
    %v99 = vld [vmem:[#allocation5 + $0x168] sm:$0xff]
    %v100 = vld [vmem:[#allocation5 + $0x170] sm:$0xff]
    %v101 = vld [vmem:[#allocation5 + $0x178] sm:$0xff]
    %v102 = vld [vmem:[#allocation5 + $0x180] sm:$0xff]
    %v103 = vld [vmem:[#allocation5 + $0x188] sm:$0xff]
    %v104 = vld [vmem:[#allocation5 + $0x190] sm:$0xff]
    %v105 = vld [vmem:[#allocation5 + $0x198] sm:$0xff]
    %v106 = vld [vmem:[#allocation5 + $0x1a0] sm:$0xff]
    %v107 = vld [vmem:[#allocation5 + $0x1a8] sm:$0xff]
    %v108 = vld [vmem:[#allocation5 + $0x1b0] sm:$0xff]
    %v109 = vld [vmem:[#allocation5 + $0x1b8] sm:$0xff]
    %v110 = vld [vmem:[#allocation5 + $0x1c0] sm:$0xff]
    %v111 = vld [vmem:[#allocation5 + $0x1c8] sm:$0xff]
    %v112 = vld [vmem:[#allocation5 + $0x1d0] sm:$0xff]
    %v113 = vld [vmem:[#allocation5 + $0x1d8] sm:$0xff]
    %v114 = vld [vmem:[#allocation5 + $0x1e0] sm:$0xff]
    %v115 = vld [vmem:[#allocation5 + $0x1e8] sm:$0xff]
    %v116 = vld [vmem:[#allocation5 + $0x1f0] sm:$0xff]
    %v117 = vld [vmem:[#allocation5 + $0x1f8] sm:$0xff]
    %v118 = vld [vmem:[#allocation5 + $0x200] sm:$0xff]
    %v119 = vld [vmem:[#allocation5 + $0x208] sm:$0xff]
    %v120 = vld [vmem:[#allocation5 + $0x210] sm:$0xff]
    %v121 = vld [vmem:[#allocation5 + $0x218] sm:$0xff]
    %v122 = vld [vmem:[#allocation5 + $0x220] sm:$0xff]
    %v123 = vld [vmem:[#allocation5 + $0x228] sm:$0xff]
    %v124 = vld [vmem:[#allocation5 + $0x230] sm:$0xff]
    %v125 = vld [vmem:[#allocation5 + $0x238] sm:$0xff]
    %v126 = vld [vmem:[#allocation5 + $0x240] sm:$0xff]
    %v127 = vld [vmem:[#allocation5 + $0x248] sm:$0xff]
    %v128 = vld [vmem:[#allocation5 + $0x250] sm:$0xff]
    %v129 = vld [vmem:[#allocation5 + $0x258] sm:$0xff]
    %v130 = vld [vmem:[#allocation5 + $0x260] sm:$0xff]
    %v131 = vld [vmem:[#allocation5 + $0x268] sm:$0xff]
    %v132 = vld [vmem:[#allocation5 + $0x270] sm:$0xff]
    %v133 = vld [vmem:[#allocation5 + $0x278] sm:$0xff]
    %v134 = vld [vmem:[#allocation5 + $0x280] sm:$0xff]
    %v135 = vld [vmem:[#allocation5 + $0x288] sm:$0xff]
    %v136 = vld [vmem:[#allocation5 + $0x290] sm:$0xff]
    %v137 = vld [vmem:[#allocation5 + $0x298] sm:$0xff]
    %v138 = vld [vmem:[#allocation5 + $0x2a0] sm:$0xff]
    %v139 = vld [vmem:[#allocation5 + $0x2a8] sm:$0xff]
    %v140 = vld [vmem:[#allocation5 + $0x2b0] sm:$0xff]
    %v141 = vld [vmem:[#allocation5 + $0x2b8] sm:$0xff]
    %v142 = vld [vmem:[#allocation5 + $0x2c0] sm:$0xff]
    %v143 = vld [vmem:[#allocation5 + $0x2c8] sm:$0xff]
    %v144 = vld [vmem:[#allocation5 + $0x2d0] sm:$0xff]
    %v145 = vld [vmem:[#allocation5 + $0x2d8] sm:$0xff]
    %v146 = vld [vmem:[#allocation5 + $0x2e0] sm:$0xff]
    %v147 = vld [vmem:[#allocation5 + $0x2e8] sm:$0xff]
    %v148 = vld [vmem:[#allocation5 + $0x2f0] sm:$0xff]
    %v149 = vld [vmem:[#allocation5 + $0x2f8] sm:$0xff]
    %v150 = vld [vmem:[#allocation5 + $0x300] sm:$0xff]
    %v151 = vld [vmem:[#allocation5 + $0x308] sm:$0xff]
    %v152 = vld [vmem:[#allocation5 + $0x310] sm:$0xff]
    %v153 = vld [vmem:[#allocation5 + $0x318] sm:$0xff]
    %v154 = vld [vmem:[#allocation5 + $0x320] sm:$0xff]
    %v155 = vld [vmem:[#allocation5 + $0x328] sm:$0xff]
    %v156 = vld [vmem:[#allocation5 + $0x330] sm:$0xff]
    %v157 = vld [vmem:[#allocation5 + $0x338] sm:$0xff]
    %v158 = vld [vmem:[#allocation5 + $0x340] sm:$0xff]
    %v159 = vld [vmem:[#allocation5 + $0x348] sm:$0xff]
    %v160 = vld [vmem:[#allocation5 + $0x350] sm:$0xff]
    %v161 = vld [vmem:[#allocation5 + $0x358] sm:$0xff]
    %v162 = vld [vmem:[#allocation5 + $0x360] sm:$0xff]
    %v163 = vld [vmem:[#allocation5 + $0x368] sm:$0xff]
    %v164 = vld [vmem:[#allocation5 + $0x370] sm:$0xff]
    %v165 = vld [vmem:[#allocation5 + $0x378] sm:$0xff]
    %v166 = vld [vmem:[#allocation5 + $0x380] sm:$0xff]
    %v167 = vld [vmem:[#allocation5 + $0x388] sm:$0xff]
    %v168 = vld [vmem:[#allocation5 + $0x390] sm:$0xff]
    %v169 = vld [vmem:[#allocation5 + $0x398] sm:$0xff]
    %v170 = vld [vmem:[#allocation5 + $0x3a0] sm:$0xff]
    %v171 = vld [vmem:[#allocation5 + $0x3a8] sm:$0xff]
    %v172 = vld [vmem:[#allocation5 + $0x3b0] sm:$0xff]
    %v173 = vld [vmem:[#allocation5 + $0x3b8] sm:$0xff]
    %v174 = vld [vmem:[#allocation5 + $0x3c0] sm:$0xff]
    %v175 = vld [vmem:[#allocation5 + $0x3c8] sm:$0xff]
    %v176 = vld [vmem:[#allocation5 + $0x3d0] sm:$0xff]
    %v177 = vld [vmem:[#allocation5 + $0x3d8] sm:$0xff]
    %v178 = vld [vmem:[#allocation5 + $0x3e0] sm:$0xff]
    %v179 = vld [vmem:[#allocation5 + $0x3e8] sm:$0xff]
    %v180 = vld [vmem:[#allocation5 + $0x3f0] sm:$0xff]
    %v181 = vld [vmem:[#allocation5 + $0x3f8] sm:$0xff]
    %v184 = vlaneseq
    %v185 = vshrl.u32 %v184, 7
    %v186 = vsub.s32 0, %v185
    %v187 = vrot.slane %v52, %v186
    %v188 = vlaneseq
    %v189 = vshrl.u32 %v188, 7
    %v190 = vsub.s32 1, %v189
    %v191 = vrot.slane %v52, %v190
    %v192 = vlaneseq
    %v193 = vshrl.u32 %v192, 7
    %v194 = vsub.s32 2, %v193
    %v195 = vrot.slane %v52, %v194
    %v196 = vlaneseq
    %v197 = vshrl.u32 %v196, 7
    %v198 = vsub.s32 3, %v197
    %v199 = vrot.slane %v52, %v198
    %v200 = vlaneseq
    %v201 = vshrl.u32 %v200, 7
    %v202 = vsub.s32 4, %v201
    %v203 = vrot.slane %v52, %v202
    %v204 = vlaneseq
    %v205 = vshrl.u32 %v204, 7
    %v206 = vsub.s32 5, %v205
    %v207 = vrot.slane %v52, %v206
    %v208 = vlaneseq
    %v209 = vshrl.u32 %v208, 7
    %v210 = vsub.s32 6, %v209
    %v211 = vrot.slane %v52, %v210
    %v212 = vlaneseq
    %v213 = vshrl.u32 %v212, 7
    %v214 = vsub.s32 7, %v213
    %v215 = vrot.slane %v52, %v214
    %v216 = vlaneseq
    %v217 = vshrl.u32 %v216, 7
    %v218 = vsub.s32 0, %v217
    %v219 = vrot.slane %v53, %v218
    %v220 = vlaneseq
    %v221 = vshrl.u32 %v220, 7
    %v222 = vsub.s32 1, %v221
    %v223 = vrot.slane %v53, %v222
    %v224 = vlaneseq
    %v225 = vshrl.u32 %v224, 7
    %v226 = vsub.s32 2, %v225
    %v227 = vrot.slane %v53, %v226
    %v228 = vlaneseq
    %v229 = vshrl.u32 %v228, 7
    %v230 = vsub.s32 3, %v229
    %v231 = vrot.slane %v53, %v230
    %v232 = vlaneseq
    %v233 = vshrl.u32 %v232, 7
    %v234 = vsub.s32 4, %v233
    %v235 = vrot.slane %v53, %v234
    %v236 = vlaneseq
    %v237 = vshrl.u32 %v236, 7
    %v238 = vsub.s32 5, %v237
    %v239 = vrot.slane %v53, %v238
    %v240 = vlaneseq
    %v241 = vshrl.u32 %v240, 7
    %v242 = vsub.s32 6, %v241
    %v243 = vrot.slane %v53, %v242
    %v244 = vlaneseq
    %v245 = vshrl.u32 %v244, 7
    %v246 = vsub.s32 7, %v245
    %v247 = vrot.slane %v53, %v246
    %264 = vmatprep.subr.mxu0 %v55
    %265 = vmatpush1.xpose.msra.mxu0 %v54
    %266 = vmatprep.subr.mxu0 %v71
    %267 = vmatpush1.xpose.msra.mxu0 %v70
    %268 = vmatprep.subr.mxu0 %v87
    %269 = vmatpush1.xpose.msra.mxu0 %v86
    %270 = vmatprep.subr.mxu0 %v103
    %271 = vmatpush1.xpose.msra.mxu0 %v102
    %272 = vmatprep.subr.mxu0 %v119
    %273 = vmatpush1.xpose.msra.mxu0 %v118
    %274 = vmatprep.subr.mxu0 %v135
    %275 = vmatpush1.xpose.msra.mxu0 %v134
    %276 = vmatprep.subr.mxu0 %v151
    %277 = vmatpush1.xpose.msra.mxu0 %v150
    %278 = vmatprep.subr.mxu0 %v167
    %279 = vmatpush1.xpose.msra.mxu0 %v166
    %280 = vmatprep.subr.mxu0 0.0
    %281 = vmatpush1.xpose.msra.mxu0 0.0
    %282 = vmatprep.subr.mxu0 0.0
    %283 = vmatpush1.xpose.msra.mxu0 0.0
    %284 = vmatprep.subr.mxu0 0.0
    %285 = vmatpush1.xpose.msra.mxu0 0.0
    %286 = vmatprep.subr.mxu0 0.0
    %287 = vmatpush1.xpose.msra.mxu0 0.0
    %288 = vmatprep.subr.mxu0 0.0
    %289 = vmatpush1.xpose.msra.mxu0 0.0
    %290 = vmatprep.subr.mxu0 0.0
    %291 = vmatpush1.xpose.msra.mxu0 0.0
    %292 = vmatprep.subr.mxu0 0.0
    %293 = vmatpush1.xpose.msra.mxu0 0.0
    %294 = vmatprep.subr.mxu0 0.0
    %295 = vmatpush1.xpose.msra.mxu0 0.0
    %296 = vmatprep.subr.mxu0 0.0
    %297 = vmatpush1.xpose.msra.mxu0 0.0
    %298 = vmatprep.subr.mxu0 0.0
    %299 = vmatpush1.xpose.msra.mxu0 0.0
    %300 = vmatprep.subr.mxu0 0.0
    %301 = vmatpush1.xpose.msra.mxu0 0.0
    %302 = vmatprep.subr.mxu0 0.0
    %303 = vmatpush1.xpose.msra.mxu0 0.0
    %304 = vmatprep.subr.mxu0 0.0
    %305 = vmatpush1.xpose.msra.mxu0 0.0
    %306 = vmatprep.subr.mxu0 0.0
    %307 = vmatpush1.xpose.msra.mxu0 0.0
    %308 = vmatprep.subr.mxu0 0.0
    %309 = vmatpush1.xpose.msra.mxu0 0.0
    %310 = vmatprep.subr.mxu0 0.0
    %311 = vmatpush1.xpose.msra.mxu0 0.0
    %312 = vmatprep.subr.mxu0 0.0
    %313 = vmatpush1.xpose.msra.mxu0 0.0
    %314 = vmatprep.subr.mxu0 0.0
    %315 = vmatpush1.xpose.msra.mxu0 0.0
    %316 = vmatprep.subr.mxu0 0.0
    %317 = vmatpush1.xpose.msra.mxu0 0.0
    %318 = vmatprep.subr.mxu0 0.0
    %319 = vmatpush1.xpose.msra.mxu0 0.0
    %320 = vmatprep.subr.mxu0 0.0
    %321 = vmatpush1.xpose.msra.mxu0 0.0
    %322 = vmatprep.subr.mxu0 0.0
    %323 = vmatpush1.xpose.msra.mxu0 0.0
    %324 = vmatprep.subr.mxu0 0.0
    %325 = vmatpush1.xpose.msra.mxu0 0.0
    %326 = vmatprep.subr.mxu0 0.0
    %327 = vmatpush1.xpose.msra.mxu0 0.0
    %328 = vmatprep.mubr.f32.mxu0 %v191
    %329 = vmatmul.mubr.f32.gmra.mrb[0].mxu0 %v187
    %v330 = vpop.f32.mrb[0].mxu0
    %v331 = vadd.f32 0.0, %v330
    %v332 = vpop.f32.mrb[0].mxu0
    %333 = vdwg.mxu0
    %334 = vmatprep.subr.mxu0 %v57
    %335 = vmatpush1.xpose.msra.mxu0 %v56
    %336 = vmatprep.subr.mxu0 %v73
    %337 = vmatpush1.xpose.msra.mxu0 %v72
    %338 = vmatprep.subr.mxu0 %v89
    %339 = vmatpush1.xpose.msra.mxu0 %v88
    %340 = vmatprep.subr.mxu0 %v105
    %341 = vmatpush1.xpose.msra.mxu0 %v104
    %342 = vmatprep.subr.mxu0 %v121
    %343 = vmatpush1.xpose.msra.mxu0 %v120
    %344 = vmatprep.subr.mxu0 %v137
    %345 = vmatpush1.xpose.msra.mxu0 %v136
    %346 = vmatprep.subr.mxu0 %v153
    %347 = vmatpush1.xpose.msra.mxu0 %v152
    %348 = vmatprep.subr.mxu0 %v169
    %349 = vmatpush1.xpose.msra.mxu0 %v168
    %350 = vmatprep.subr.mxu0 0.0
    %351 = vmatpush1.xpose.msra.mxu0 0.0
    %352 = vmatprep.subr.mxu0 0.0
    %353 = vmatpush1.xpose.msra.mxu0 0.0
    %354 = vmatprep.subr.mxu0 0.0
    %355 = vmatpush1.xpose.msra.mxu0 0.0
    %356 = vmatprep.subr.mxu0 0.0
    %357 = vmatpush1.xpose.msra.mxu0 0.0
    %358 = vmatprep.subr.mxu0 0.0
    %359 = vmatpush1.xpose.msra.mxu0 0.0
    %360 = vmatprep.subr.mxu0 0.0
    %361 = vmatpush1.xpose.msra.mxu0 0.0
    %362 = vmatprep.subr.mxu0 0.0
    %363 = vmatpush1.xpose.msra.mxu0 0.0
    %364 = vmatprep.subr.mxu0 0.0
    %365 = vmatpush1.xpose.msra.mxu0 0.0
    %366 = vmatprep.subr.mxu0 0.0
    %367 = vmatpush1.xpose.msra.mxu0 0.0
    %368 = vmatprep.subr.mxu0 0.0
    %369 = vmatpush1.xpose.msra.mxu0 0.0
    %370 = vmatprep.subr.mxu0 0.0
    %371 = vmatpush1.xpose.msra.mxu0 0.0
    %372 = vmatprep.subr.mxu0 0.0
    %373 = vmatpush1.xpose.msra.mxu0 0.0
    %374 = vmatprep.subr.mxu0 0.0
    %375 = vmatpush1.xpose.msra.mxu0 0.0
    %376 = vmatprep.subr.mxu0 0.0
    %377 = vmatpush1.xpose.msra.mxu0 0.0
    %378 = vmatprep.subr.mxu0 0.0
    %379 = vmatpush1.xpose.msra.mxu0 0.0
    %380 = vmatprep.subr.mxu0 0.0
    %381 = vmatpush1.xpose.msra.mxu0 0.0
    %382 = vmatprep.subr.mxu0 0.0
    %383 = vmatpush1.xpose.msra.mxu0 0.0
    %384 = vmatprep.subr.mxu0 0.0
    %385 = vmatpush1.xpose.msra.mxu0 0.0
    %386 = vmatprep.subr.mxu0 0.0
    %387 = vmatpush1.xpose.msra.mxu0 0.0
    %388 = vmatprep.subr.mxu0 0.0
    %389 = vmatpush1.xpose.msra.mxu0 0.0
    %390 = vmatprep.subr.mxu0 0.0
    %391 = vmatpush1.xpose.msra.mxu0 0.0
    %392 = vmatprep.subr.mxu0 0.0
    %393 = vmatpush1.xpose.msra.mxu0 0.0
    %394 = vmatprep.subr.mxu0 0.0
    %395 = vmatpush1.xpose.msra.mxu0 0.0
    %396 = vmatprep.subr.mxu0 0.0
    %397 = vmatpush1.xpose.msra.mxu0 0.0
    %398 = vmatprep.mubr.f32.mxu0 %v199
    %399 = vmatmul.mubr.f32.gmra.mrb[0].mxu0 %v195
    %v400 = vpop.f32.mrb[0].mxu0
    %v401 = vadd.f32 %v331, %v400
    %v402 = vpop.f32.mrb[0].mxu0
    %403 = vdwg.mxu0
    %404 = vmatprep.subr.mxu0 %v59
    %405 = vmatpush1.xpose.msra.mxu0 %v58
    %406 = vmatprep.subr.mxu0 %v75
    %407 = vmatpush1.xpose.msra.mxu0 %v74
    %408 = vmatprep.subr.mxu0 %v91
    %409 = vmatpush1.xpose.msra.mxu0 %v90
    %410 = vmatprep.subr.mxu0 %v107
    %411 = vmatpush1.xpose.msra.mxu0 %v106
    %412 = vmatprep.subr.mxu0 %v123
    %413 = vmatpush1.xpose.msra.mxu0 %v122
    %414 = vmatprep.subr.mxu0 %v139
    %415 = vmatpush1.xpose.msra.mxu0 %v138
    %416 = vmatprep.subr.mxu0 %v155
    %417 = vmatpush1.xpose.msra.mxu0 %v154
    %418 = vmatprep.subr.mxu0 %v171
    %419 = vmatpush1.xpose.msra.mxu0 %v170
    %420 = vmatprep.subr.mxu0 0.0
    %421 = vmatpush1.xpose.msra.mxu0 0.0
    %422 = vmatprep.subr.mxu0 0.0
    %423 = vmatpush1.xpose.msra.mxu0 0.0
    %424 = vmatprep.subr.mxu0 0.0
    %425 = vmatpush1.xpose.msra.mxu0 0.0
    %426 = vmatprep.subr.mxu0 0.0
    %427 = vmatpush1.xpose.msra.mxu0 0.0
    %428 = vmatprep.subr.mxu0 0.0
    %429 = vmatpush1.xpose.msra.mxu0 0.0
    %430 = vmatprep.subr.mxu0 0.0
    %431 = vmatpush1.xpose.msra.mxu0 0.0
    %432 = vmatprep.subr.mxu0 0.0
    %433 = vmatpush1.xpose.msra.mxu0 0.0
    %434 = vmatprep.subr.mxu0 0.0
    %435 = vmatpush1.xpose.msra.mxu0 0.0
    %436 = vmatprep.subr.mxu0 0.0
    %437 = vmatpush1.xpose.msra.mxu0 0.0
    %438 = vmatprep.subr.mxu0 0.0
    %439 = vmatpush1.xpose.msra.mxu0 0.0
    %440 = vmatprep.subr.mxu0 0.0
    %441 = vmatpush1.xpose.msra.mxu0 0.0
    %442 = vmatprep.subr.mxu0 0.0
    %443 = vmatpush1.xpose.msra.mxu0 0.0
    %444 = vmatprep.subr.mxu0 0.0
    %445 = vmatpush1.xpose.msra.mxu0 0.0
    %446 = vmatprep.subr.mxu0 0.0
    %447 = vmatpush1.xpose.msra.mxu0 0.0
    %448 = vmatprep.subr.mxu0 0.0
    %449 = vmatpush1.xpose.msra.mxu0 0.0
    %450 = vmatprep.subr.mxu0 0.0
    %451 = vmatpush1.xpose.msra.mxu0 0.0
    %452 = vmatprep.subr.mxu0 0.0
    %453 = vmatpush1.xpose.msra.mxu0 0.0
    %454 = vmatprep.subr.mxu0 0.0
    %455 = vmatpush1.xpose.msra.mxu0 0.0
    %456 = vmatprep.subr.mxu0 0.0
    %457 = vmatpush1.xpose.msra.mxu0 0.0
    %458 = vmatprep.subr.mxu0 0.0
    %459 = vmatpush1.xpose.msra.mxu0 0.0
    %460 = vmatprep.subr.mxu0 0.0
    %461 = vmatpush1.xpose.msra.mxu0 0.0
    %462 = vmatprep.subr.mxu0 0.0
    %463 = vmatpush1.xpose.msra.mxu0 0.0
    %464 = vmatprep.subr.mxu0 0.0
    %465 = vmatpush1.xpose.msra.mxu0 0.0
    %466 = vmatprep.subr.mxu0 0.0
    %467 = vmatpush1.xpose.msra.mxu0 0.0
    %468 = vmatprep.mubr.f32.mxu0 %v207
    %469 = vmatmul.mubr.f32.gmra.mrb[0].mxu0 %v203
    %v470 = vpop.f32.mrb[0].mxu0
    %v471 = vadd.f32 %v401, %v470
    %v472 = vpop.f32.mrb[0].mxu0
    %473 = vdwg.mxu0
    %474 = vmatprep.subr.mxu0 %v61
    %475 = vmatpush1.xpose.msra.mxu0 %v60
    %476 = vmatprep.subr.mxu0 %v77
    %477 = vmatpush1.xpose.msra.mxu0 %v76
    %478 = vmatprep.subr.mxu0 %v93
    %479 = vmatpush1.xpose.msra.mxu0 %v92
    %480 = vmatprep.subr.mxu0 %v109
    %481 = vmatpush1.xpose.msra.mxu0 %v108
    %482 = vmatprep.subr.mxu0 %v125
    %483 = vmatpush1.xpose.msra.mxu0 %v124
    %484 = vmatprep.subr.mxu0 %v141
    %485 = vmatpush1.xpose.msra.mxu0 %v140
    %486 = vmatprep.subr.mxu0 %v157
    %487 = vmatpush1.xpose.msra.mxu0 %v156
    %488 = vmatprep.subr.mxu0 %v173
    %489 = vmatpush1.xpose.msra.mxu0 %v172
    %490 = vmatprep.subr.mxu0 0.0
    %491 = vmatpush1.xpose.msra.mxu0 0.0
    %492 = vmatprep.subr.mxu0 0.0
    %493 = vmatpush1.xpose.msra.mxu0 0.0
    %494 = vmatprep.subr.mxu0 0.0
    %495 = vmatpush1.xpose.msra.mxu0 0.0
    %496 = vmatprep.subr.mxu0 0.0
    %497 = vmatpush1.xpose.msra.mxu0 0.0
    %498 = vmatprep.subr.mxu0 0.0
    %499 = vmatpush1.xpose.msra.mxu0 0.0
    %500 = vmatprep.subr.mxu0 0.0
    %501 = vmatpush1.xpose.msra.mxu0 0.0
    %502 = vmatprep.subr.mxu0 0.0
    %503 = vmatpush1.xpose.msra.mxu0 0.0
    %504 = vmatprep.subr.mxu0 0.0
    %505 = vmatpush1.xpose.msra.mxu0 0.0
    %506 = vmatprep.subr.mxu0 0.0
    %507 = vmatpush1.xpose.msra.mxu0 0.0
    %508 = vmatprep.subr.mxu0 0.0
    %509 = vmatpush1.xpose.msra.mxu0 0.0
    %510 = vmatprep.subr.mxu0 0.0
    %511 = vmatpush1.xpose.msra.mxu0 0.0
    %512 = vmatprep.subr.mxu0 0.0
    %513 = vmatpush1.xpose.msra.mxu0 0.0
    %514 = vmatprep.subr.mxu0 0.0
    %515 = vmatpush1.xpose.msra.mxu0 0.0
    %516 = vmatprep.subr.mxu0 0.0
    %517 = vmatpush1.xpose.msra.mxu0 0.0
    %518 = vmatprep.subr.mxu0 0.0
    %519 = vmatpush1.xpose.msra.mxu0 0.0
    %520 = vmatprep.subr.mxu0 0.0
    %521 = vmatpush1.xpose.msra.mxu0 0.0
    %522 = vmatprep.subr.mxu0 0.0
    %523 = vmatpush1.xpose.msra.mxu0 0.0
    %524 = vmatprep.subr.mxu0 0.0
    %525 = vmatpush1.xpose.msra.mxu0 0.0
    %526 = vmatprep.subr.mxu0 0.0
    %527 = vmatpush1.xpose.msra.mxu0 0.0
    %528 = vmatprep.subr.mxu0 0.0
    %529 = vmatpush1.xpose.msra.mxu0 0.0
    %530 = vmatprep.subr.mxu0 0.0
    %531 = vmatpush1.xpose.msra.mxu0 0.0
    %532 = vmatprep.subr.mxu0 0.0
    %533 = vmatpush1.xpose.msra.mxu0 0.0
    %534 = vmatprep.subr.mxu0 0.0
    %535 = vmatpush1.xpose.msra.mxu0 0.0
    %536 = vmatprep.subr.mxu0 0.0
    %537 = vmatpush1.xpose.msra.mxu0 0.0
    %538 = vmatprep.mubr.f32.mxu0 %v215
    %539 = vmatmul.mubr.f32.gmra.mrb[0].mxu0 %v211
    %v540 = vpop.f32.mrb[0].mxu0
    %v541 = vadd.f32 %v471, %v540
    %v542 = vpop.f32.mrb[0].mxu0
    %543 = vdwg.mxu0
    %544 = vmatprep.subr.mxu0 %v63
    %545 = vmatpush1.xpose.msra.mxu0 %v62
    %546 = vmatprep.subr.mxu0 %v79
    %547 = vmatpush1.xpose.msra.mxu0 %v78
    %548 = vmatprep.subr.mxu0 %v95
    %549 = vmatpush1.xpose.msra.mxu0 %v94
    %550 = vmatprep.subr.mxu0 %v111
    %551 = vmatpush1.xpose.msra.mxu0 %v110
    %552 = vmatprep.subr.mxu0 %v127
    %553 = vmatpush1.xpose.msra.mxu0 %v126
    %554 = vmatprep.subr.mxu0 %v143
    %555 = vmatpush1.xpose.msra.mxu0 %v142
    %556 = vmatprep.subr.mxu0 %v159
    %557 = vmatpush1.xpose.msra.mxu0 %v158
    %558 = vmatprep.subr.mxu0 %v175
    %559 = vmatpush1.xpose.msra.mxu0 %v174
    %560 = vmatprep.subr.mxu0 0.0
    %561 = vmatpush1.xpose.msra.mxu0 0.0
    %562 = vmatprep.subr.mxu0 0.0
    %563 = vmatpush1.xpose.msra.mxu0 0.0
    %564 = vmatprep.subr.mxu0 0.0
    %565 = vmatpush1.xpose.msra.mxu0 0.0
    %566 = vmatprep.subr.mxu0 0.0
    %567 = vmatpush1.xpose.msra.mxu0 0.0
    %568 = vmatprep.subr.mxu0 0.0
    %569 = vmatpush1.xpose.msra.mxu0 0.0
    %570 = vmatprep.subr.mxu0 0.0
    %571 = vmatpush1.xpose.msra.mxu0 0.0
    %572 = vmatprep.subr.mxu0 0.0
    %573 = vmatpush1.xpose.msra.mxu0 0.0
    %574 = vmatprep.subr.mxu0 0.0
    %575 = vmatpush1.xpose.msra.mxu0 0.0
    %576 = vmatprep.subr.mxu0 0.0
    %577 = vmatpush1.xpose.msra.mxu0 0.0
    %578 = vmatprep.subr.mxu0 0.0
    %579 = vmatpush1.xpose.msra.mxu0 0.0
    %580 = vmatprep.subr.mxu0 0.0
    %581 = vmatpush1.xpose.msra.mxu0 0.0
    %582 = vmatprep.subr.mxu0 0.0
    %583 = vmatpush1.xpose.msra.mxu0 0.0
    %584 = vmatprep.subr.mxu0 0.0
    %585 = vmatpush1.xpose.msra.mxu0 0.0
    %586 = vmatprep.subr.mxu0 0.0
    %587 = vmatpush1.xpose.msra.mxu0 0.0
    %588 = vmatprep.subr.mxu0 0.0
    %589 = vmatpush1.xpose.msra.mxu0 0.0
    %590 = vmatprep.subr.mxu0 0.0
    %591 = vmatpush1.xpose.msra.mxu0 0.0
    %592 = vmatprep.subr.mxu0 0.0
    %593 = vmatpush1.xpose.msra.mxu0 0.0
    %594 = vmatprep.subr.mxu0 0.0
    %595 = vmatpush1.xpose.msra.mxu0 0.0
    %596 = vmatprep.subr.mxu0 0.0
    %597 = vmatpush1.xpose.msra.mxu0 0.0
    %598 = vmatprep.subr.mxu0 0.0
    %599 = vmatpush1.xpose.msra.mxu0 0.0
    %600 = vmatprep.subr.mxu0 0.0
    %601 = vmatpush1.xpose.msra.mxu0 0.0
    %602 = vmatprep.subr.mxu0 0.0
    %603 = vmatpush1.xpose.msra.mxu0 0.0
    %604 = vmatprep.subr.mxu0 0.0
    %605 = vmatpush1.xpose.msra.mxu0 0.0
    %606 = vmatprep.subr.mxu0 0.0
    %607 = vmatpush1.xpose.msra.mxu0 0.0
    %608 = vmatprep.mubr.f32.mxu0 %v223
    %609 = vmatmul.mubr.f32.gmra.mrb[0].mxu0 %v219
    %v610 = vpop.f32.mrb[0].mxu0
    %v611 = vadd.f32 %v541, %v610
    %v612 = vpop.f32.mrb[0].mxu0
    %613 = vdwg.mxu0
    %614 = vmatprep.subr.mxu0 %v65
    %615 = vmatpush1.xpose.msra.mxu0 %v64
    %616 = vmatprep.subr.mxu0 %v81
    %617 = vmatpush1.xpose.msra.mxu0 %v80
    %618 = vmatprep.subr.mxu0 %v97
    %619 = vmatpush1.xpose.msra.mxu0 %v96
    %620 = vmatprep.subr.mxu0 %v113
    %621 = vmatpush1.xpose.msra.mxu0 %v112
    %622 = vmatprep.subr.mxu0 %v129
    %623 = vmatpush1.xpose.msra.mxu0 %v128
    %624 = vmatprep.subr.mxu0 %v145
    %625 = vmatpush1.xpose.msra.mxu0 %v144
    %626 = vmatprep.subr.mxu0 %v161
    %627 = vmatpush1.xpose.msra.mxu0 %v160
    %628 = vmatprep.subr.mxu0 %v177
    %629 = vmatpush1.xpose.msra.mxu0 %v176
    %630 = vmatprep.subr.mxu0 0.0
    %631 = vmatpush1.xpose.msra.mxu0 0.0
    %632 = vmatprep.subr.mxu0 0.0
    %633 = vmatpush1.xpose.msra.mxu0 0.0
    %634 = vmatprep.subr.mxu0 0.0
    %635 = vmatpush1.xpose.msra.mxu0 0.0
    %636 = vmatprep.subr.mxu0 0.0
    %637 = vmatpush1.xpose.msra.mxu0 0.0
    %638 = vmatprep.subr.mxu0 0.0
    %639 = vmatpush1.xpose.msra.mxu0 0.0
    %640 = vmatprep.subr.mxu0 0.0
    %641 = vmatpush1.xpose.msra.mxu0 0.0
    %642 = vmatprep.subr.mxu0 0.0
    %643 = vmatpush1.xpose.msra.mxu0 0.0
    %644 = vmatprep.subr.mxu0 0.0
    %645 = vmatpush1.xpose.msra.mxu0 0.0
    %646 = vmatprep.subr.mxu0 0.0
    %647 = vmatpush1.xpose.msra.mxu0 0.0
    %648 = vmatprep.subr.mxu0 0.0
    %649 = vmatpush1.xpose.msra.mxu0 0.0
    %650 = vmatprep.subr.mxu0 0.0
    %651 = vmatpush1.xpose.msra.mxu0 0.0
    %652 = vmatprep.subr.mxu0 0.0
    %653 = vmatpush1.xpose.msra.mxu0 0.0
    %654 = vmatprep.subr.mxu0 0.0
    %655 = vmatpush1.xpose.msra.mxu0 0.0
    %656 = vmatprep.subr.mxu0 0.0
    %657 = vmatpush1.xpose.msra.mxu0 0.0
    %658 = vmatprep.subr.mxu0 0.0
    %659 = vmatpush1.xpose.msra.mxu0 0.0
    %660 = vmatprep.subr.mxu0 0.0
    %661 = vmatpush1.xpose.msra.mxu0 0.0
    %662 = vmatprep.subr.mxu0 0.0
    %663 = vmatpush1.xpose.msra.mxu0 0.0
    %664 = vmatprep.subr.mxu0 0.0
    %665 = vmatpush1.xpose.msra.mxu0 0.0
    %666 = vmatprep.subr.mxu0 0.0
    %667 = vmatpush1.xpose.msra.mxu0 0.0
    %668 = vmatprep.subr.mxu0 0.0
    %669 = vmatpush1.xpose.msra.mxu0 0.0
    %670 = vmatprep.subr.mxu0 0.0
    %671 = vmatpush1.xpose.msra.mxu0 0.0
    %672 = vmatprep.subr.mxu0 0.0
    %673 = vmatpush1.xpose.msra.mxu0 0.0
    %674 = vmatprep.subr.mxu0 0.0
    %675 = vmatpush1.xpose.msra.mxu0 0.0
    %676 = vmatprep.subr.mxu0 0.0
    %677 = vmatpush1.xpose.msra.mxu0 0.0
    %678 = vmatprep.mubr.f32.mxu0 %v231
    %679 = vmatmul.mubr.f32.gmra.mrb[0].mxu0 %v227
    %v680 = vpop.f32.mrb[0].mxu0
    %v681 = vadd.f32 %v611, %v680
    %v682 = vpop.f32.mrb[0].mxu0
    %683 = vdwg.mxu0
    %684 = vmatprep.subr.mxu0 %v67
    %685 = vmatpush1.xpose.msra.mxu0 %v66
    %686 = vmatprep.subr.mxu0 %v83
    %687 = vmatpush1.xpose.msra.mxu0 %v82
    %688 = vmatprep.subr.mxu0 %v99
    %689 = vmatpush1.xpose.msra.mxu0 %v98
    %690 = vmatprep.subr.mxu0 %v115
    %691 = vmatpush1.xpose.msra.mxu0 %v114
    %692 = vmatprep.subr.mxu0 %v131
    %693 = vmatpush1.xpose.msra.mxu0 %v130
    %694 = vmatprep.subr.mxu0 %v147
    %695 = vmatpush1.xpose.msra.mxu0 %v146
    %696 = vmatprep.subr.mxu0 %v163
    %697 = vmatpush1.xpose.msra.mxu0 %v162
    %698 = vmatprep.subr.mxu0 %v179
    %699 = vmatpush1.xpose.msra.mxu0 %v178
    %700 = vmatprep.subr.mxu0 0.0
    %701 = vmatpush1.xpose.msra.mxu0 0.0
    %702 = vmatprep.subr.mxu0 0.0
    %703 = vmatpush1.xpose.msra.mxu0 0.0
    %704 = vmatprep.subr.mxu0 0.0
    %705 = vmatpush1.xpose.msra.mxu0 0.0
    %706 = vmatprep.subr.mxu0 0.0
    %707 = vmatpush1.xpose.msra.mxu0 0.0
    %708 = vmatprep.subr.mxu0 0.0
    %709 = vmatpush1.xpose.msra.mxu0 0.0
    %710 = vmatprep.subr.mxu0 0.0
    %711 = vmatpush1.xpose.msra.mxu0 0.0
    %712 = vmatprep.subr.mxu0 0.0
    %713 = vmatpush1.xpose.msra.mxu0 0.0
    %714 = vmatprep.subr.mxu0 0.0
    %715 = vmatpush1.xpose.msra.mxu0 0.0
    %716 = vmatprep.subr.mxu0 0.0
    %717 = vmatpush1.xpose.msra.mxu0 0.0
    %718 = vmatprep.subr.mxu0 0.0
    %719 = vmatpush1.xpose.msra.mxu0 0.0
    %720 = vmatprep.subr.mxu0 0.0
    %721 = vmatpush1.xpose.msra.mxu0 0.0
    %722 = vmatprep.subr.mxu0 0.0
    %723 = vmatpush1.xpose.msra.mxu0 0.0
    %724 = vmatprep.subr.mxu0 0.0
    %725 = vmatpush1.xpose.msra.mxu0 0.0
    %726 = vmatprep.subr.mxu0 0.0
    %727 = vmatpush1.xpose.msra.mxu0 0.0
    %728 = vmatprep.subr.mxu0 0.0
    %729 = vmatpush1.xpose.msra.mxu0 0.0
    %730 = vmatprep.subr.mxu0 0.0
    %731 = vmatpush1.xpose.msra.mxu0 0.0
    %732 = vmatprep.subr.mxu0 0.0
    %733 = vmatpush1.xpose.msra.mxu0 0.0
    %734 = vmatprep.subr.mxu0 0.0
    %735 = vmatpush1.xpose.msra.mxu0 0.0
    %736 = vmatprep.subr.mxu0 0.0
    %737 = vmatpush1.xpose.msra.mxu0 0.0
    %738 = vmatprep.subr.mxu0 0.0
    %739 = vmatpush1.xpose.msra.mxu0 0.0
    %740 = vmatprep.subr.mxu0 0.0
    %741 = vmatpush1.xpose.msra.mxu0 0.0
    %742 = vmatprep.subr.mxu0 0.0
    %743 = vmatpush1.xpose.msra.mxu0 0.0
    %744 = vmatprep.subr.mxu0 0.0
    %745 = vmatpush1.xpose.msra.mxu0 0.0
    %746 = vmatprep.subr.mxu0 0.0
    %747 = vmatpush1.xpose.msra.mxu0 0.0
    %748 = vmatprep.mubr.f32.mxu0 %v239
    %749 = vmatmul.mubr.f32.gmra.mrb[0].mxu0 %v235
    %v750 = vpop.f32.mrb[0].mxu0
    %v751 = vadd.f32 %v681, %v750
    %v752 = vpop.f32.mrb[0].mxu0
    %753 = vdwg.mxu0
    %754 = vmatprep.subr.mxu0 %v69
    %755 = vmatpush1.xpose.msra.mxu0 %v68
    %756 = vmatprep.subr.mxu0 %v85
    %757 = vmatpush1.xpose.msra.mxu0 %v84
    %758 = vmatprep.subr.mxu0 %v101
    %759 = vmatpush1.xpose.msra.mxu0 %v100
    %760 = vmatprep.subr.mxu0 %v117
    %761 = vmatpush1.xpose.msra.mxu0 %v116
    %762 = vmatprep.subr.mxu0 %v133
    %763 = vmatpush1.xpose.msra.mxu0 %v132
    %764 = vmatprep.subr.mxu0 %v149
    %765 = vmatpush1.xpose.msra.mxu0 %v148
    %766 = vmatprep.subr.mxu0 %v165
    %767 = vmatpush1.xpose.msra.mxu0 %v164
    %768 = vmatprep.subr.mxu0 %v181
    %769 = vmatpush1.xpose.msra.mxu0 %v180
    %770 = vmatprep.subr.mxu0 0.0
    %771 = vmatpush1.xpose.msra.mxu0 0.0
    %772 = vmatprep.subr.mxu0 0.0
    %773 = vmatpush1.xpose.msra.mxu0 0.0
    %774 = vmatprep.subr.mxu0 0.0
    %775 = vmatpush1.xpose.msra.mxu0 0.0
    %776 = vmatprep.subr.mxu0 0.0
    %777 = vmatpush1.xpose.msra.mxu0 0.0
    %778 = vmatprep.subr.mxu0 0.0
    %779 = vmatpush1.xpose.msra.mxu0 0.0
    %780 = vmatprep.subr.mxu0 0.0
    %781 = vmatpush1.xpose.msra.mxu0 0.0
    %782 = vmatprep.subr.mxu0 0.0
    %783 = vmatpush1.xpose.msra.mxu0 0.0
    %784 = vmatprep.subr.mxu0 0.0
    %785 = vmatpush1.xpose.msra.mxu0 0.0
    %786 = vmatprep.subr.mxu0 0.0
    %787 = vmatpush1.xpose.msra.mxu0 0.0
    %788 = vmatprep.subr.mxu0 0.0
    %789 = vmatpush1.xpose.msra.mxu0 0.0
    %790 = vmatprep.subr.mxu0 0.0
    %791 = vmatpush1.xpose.msra.mxu0 0.0
    %792 = vmatprep.subr.mxu0 0.0
    %793 = vmatpush1.xpose.msra.mxu0 0.0
    %794 = vmatprep.subr.mxu0 0.0
    %795 = vmatpush1.xpose.msra.mxu0 0.0
    %796 = vmatprep.subr.mxu0 0.0
    %797 = vmatpush1.xpose.msra.mxu0 0.0
    %798 = vmatprep.subr.mxu0 0.0
    %799 = vmatpush1.xpose.msra.mxu0 0.0
    %800 = vmatprep.subr.mxu0 0.0
    %801 = vmatpush1.xpose.msra.mxu0 0.0
    %802 = vmatprep.subr.mxu0 0.0
    %803 = vmatpush1.xpose.msra.mxu0 0.0
    %804 = vmatprep.subr.mxu0 0.0
    %805 = vmatpush1.xpose.msra.mxu0 0.0
    %806 = vmatprep.subr.mxu0 0.0
    %807 = vmatpush1.xpose.msra.mxu0 0.0
    %808 = vmatprep.subr.mxu0 0.0
    %809 = vmatpush1.xpose.msra.mxu0 0.0
    %810 = vmatprep.subr.mxu0 0.0
    %811 = vmatpush1.xpose.msra.mxu0 0.0
    %812 = vmatprep.subr.mxu0 0.0
    %813 = vmatpush1.xpose.msra.mxu0 0.0
    %814 = vmatprep.subr.mxu0 0.0
    %815 = vmatpush1.xpose.msra.mxu0 0.0
    %816 = vmatprep.subr.mxu0 0.0
    %817 = vmatpush1.xpose.msra.mxu0 0.0
    %818 = vmatprep.mubr.f32.mxu0 %v247
    %819 = vmatmul.mubr.f32.gmra.mrb[0].mxu0 %v243
    %v820 = vpop.f32.mrb[0].mxu0
    %v821 = vadd.f32 %v751, %v820
    %v822 = vpop.f32.mrb[0].mxu0
    %823 = vdwg.mxu0
    %v824 = vlaneseq
    %v825 = vand.u32 %v824, 127
    %vm826 = vcmask 516096
    %v827 = vsel %vm826, %v821, inf
    %828 = vmin.xlane.f32.xlu0 %v827
    %v829 = vpop.xlane.xlu0 %828
    %vm830 = vcmp.eq.f32.partialorder %v821, %v829
    %v831 = vsel %vm830, %v825, 64
    %v832 = vsel %vm826, %v831, 2147483647
    %v833 = vand.u32 %v832, 65535
    %v834 = vshra.s32 %v832, 16
    %v835 = vcvt.s32.f32 %v833
    %v836 = vcvt.s32.f32 %v834
    %837 = vmin.xlane.f32.xlu0 %v836
    %v838 = vpop.xlane.xlu0 %837
    %vm839 = vcmp.eq.f32.partialorder %v836, %v838
    %v840 = vsel %vm839, %v835, inf
    %841 = vmin.xlane.f32.xlu0 %v840
    %v842 = vpop.xlane.xlu0 %841
    %v843 = vcvt.f32.s32 %v842
    %v844 = vcvt.f32.s32 %v838
    %v845 = vshll.u32 %v844, 16
    %v846 = vadd.s32 %v845, %v843
    %vm847 = vcmp.ne.s32.totalorder %v825, %v846
    %vm848 = vcmp.eq.s32.totalorder %v825, 0
    %v849 = vsel %vm848, %v829, inf
    %v850 = vsel %vm847, %v821, inf
    %v851 = vsel %vm826, %v850, inf
    %852 = vmin.xlane.f32.xlu0 %v851
    %v853 = vpop.xlane.xlu0 %852
    %vm854 = vcmp.eq.f32.partialorder %v821, %v853
    %vm855 = vmand %vm847, %vm854
    %v856 = vsel %vm855, %v825, 64
    %v857 = vsel %vm826, %v856, 2147483647
    %v858 = vand.u32 %v857, 65535
    %v859 = vshra.s32 %v857, 16
    %v860 = vcvt.s32.f32 %v858
    %v861 = vcvt.s32.f32 %v859
    %862 = vmin.xlane.f32.xlu0 %v861
    %v863 = vpop.xlane.xlu0 %862
    %vm864 = vcmp.eq.f32.partialorder %v861, %v863
    %v865 = vsel %vm864, %v860, inf
    %866 = vmin.xlane.f32.xlu0 %v865
    %v867 = vpop.xlane.xlu0 %866
    %v868 = vcvt.f32.s32 %v867
    %v869 = vcvt.f32.s32 %v863
    %v870 = vshll.u32 %v869, 16
    %v871 = vadd.s32 %v870, %v868
    %vm872 = vcmp.ne.s32.totalorder %v825, %v871
    %vm873 = vmand %vm847, %vm872
    %vm874 = vcmp.eq.s32.totalorder %v825, 1
    %v875 = vsel %vm874, %v853, %v849
    %v876 = vsel %vm873, %v821, inf
    %v877 = vsel %vm826, %v876, inf
    %878 = vmin.xlane.f32.xlu0 %v877
    %v879 = vpop.xlane.xlu0 %878
    %vm880 = vcmp.eq.f32.partialorder %v821, %v879
    %vm881 = vmand %vm873, %vm880
    %v882 = vsel %vm881, %v825, 64
    %v883 = vsel %vm826, %v882, 2147483647
    %v884 = vand.u32 %v883, 65535
    %v885 = vshra.s32 %v883, 16
    %v886 = vcvt.s32.f32 %v884
    %v887 = vcvt.s32.f32 %v885
    %888 = vmin.xlane.f32.xlu0 %v887
    %v889 = vpop.xlane.xlu0 %888
    %vm890 = vcmp.eq.f32.partialorder %v887, %v889
    %v891 = vsel %vm890, %v886, inf
    %892 = vmin.xlane.f32.xlu0 %v891
    %v893 = vpop.xlane.xlu0 %892
    %v894 = vcvt.f32.s32 %v893
    %v895 = vcvt.f32.s32 %v889
    %v896 = vshll.u32 %v895, 16
    %v897 = vadd.s32 %v896, %v894
    %vm898 = vcmp.ne.s32.totalorder %v825, %v897
    %vm899 = vmand %vm873, %vm898
    %vm900 = vcmp.eq.s32.totalorder %v825, 2
    %v901 = vsel %vm900, %v879, %v875
    %v902 = vsel %vm899, %v821, inf
    %v903 = vsel %vm826, %v902, inf
    %904 = vmin.xlane.f32.xlu0 %v903
    %v905 = vpop.xlane.xlu0 %904
    %vm906 = vcmp.eq.f32.partialorder %v821, %v905
    %vm907 = vmand %vm899, %vm906
    %v908 = vsel %vm907, %v825, 64
    %v909 = vsel %vm826, %v908, 2147483647
    %v910 = vand.u32 %v909, 65535
    %v911 = vshra.s32 %v909, 16
    %v912 = vcvt.s32.f32 %v910
    %v913 = vcvt.s32.f32 %v911
    %914 = vmin.xlane.f32.xlu0 %v913
    %v915 = vpop.xlane.xlu0 %914
    %vm916 = vcmp.eq.f32.partialorder %v913, %v915
    %v917 = vsel %vm916, %v912, inf
    %918 = vmin.xlane.f32.xlu0 %v917
    %v919 = vpop.xlane.xlu0 %918
    %v920 = vcvt.f32.s32 %v919
    %v921 = vcvt.f32.s32 %v915
    %v922 = vshll.u32 %v921, 16
    %v923 = vadd.s32 %v922, %v920
    %vm924 = vcmp.ne.s32.totalorder %v825, %v923
    %vm925 = vmand %vm899, %vm924
    %vm926 = vcmp.eq.s32.totalorder %v825, 3
    %v927 = vsel %vm926, %v905, %v901
    %v928 = vsel %vm925, %v821, inf
    %v929 = vsel %vm826, %v928, inf
    %930 = vmin.xlane.f32.xlu0 %v929
    %v931 = vpop.xlane.xlu0 %930
    %vm932 = vcmp.eq.s32.totalorder %v825, 4
    %v933 = vsel %vm932, %v931, %v927
    %v934 = vsel %vm826, %v821, -inf
    %935 = vmax.xlane.f32.xlu0 %v934
    %v936 = vpop.xlane.xlu0 %935
    %vm937 = vcmp.eq.f32.partialorder %v821, %v936
    %v938 = vsel %vm937, %v825, 64
    %v939 = vsel %vm826, %v938, 2147483647
    %v940 = vand.u32 %v939, 65535
    %v941 = vshra.s32 %v939, 16
    %v942 = vcvt.s32.f32 %v940
    %v943 = vcvt.s32.f32 %v941
    %944 = vmin.xlane.f32.xlu0 %v943
    %v945 = vpop.xlane.xlu0 %944
    %vm946 = vcmp.eq.f32.partialorder %v943, %v945
    %v947 = vsel %vm946, %v942, inf
    %948 = vmin.xlane.f32.xlu0 %v947
    %v949 = vpop.xlane.xlu0 %948
    %v950 = vcvt.f32.s32 %v949
    %v951 = vcvt.f32.s32 %v945
    %v952 = vshll.u32 %v951, 16
    %v953 = vadd.s32 %v952, %v950
    %vm954 = vcmp.ne.s32.totalorder %v825, %v953
    %v955 = vsel %vm848, %v936, -inf
    %v956 = vsel %vm954, %v821, -inf
    %v957 = vsel %vm826, %v956, -inf
    %958 = vmax.xlane.f32.xlu0 %v957
    %v959 = vpop.xlane.xlu0 %958
    %vm960 = vcmp.eq.f32.partialorder %v821, %v959
    %vm961 = vmand %vm954, %vm960
    %v962 = vsel %vm961, %v825, 64
    %v963 = vsel %vm826, %v962, 2147483647
    %v964 = vand.u32 %v963, 65535
    %v965 = vshra.s32 %v963, 16
    %v966 = vcvt.s32.f32 %v964
    %v967 = vcvt.s32.f32 %v965
    %968 = vmin.xlane.f32.xlu0 %v967
    %v969 = vpop.xlane.xlu0 %968
    %vm970 = vcmp.eq.f32.partialorder %v967, %v969
    %v971 = vsel %vm970, %v966, inf
    %972 = vmin.xlane.f32.xlu0 %v971
    %v973 = vpop.xlane.xlu0 %972
    %v974 = vcvt.f32.s32 %v973
    %v975 = vcvt.f32.s32 %v969
    %v976 = vshll.u32 %v975, 16
    %v977 = vadd.s32 %v976, %v974
    %vm978 = vcmp.ne.s32.totalorder %v825, %v977
    %vm979 = vmand %vm954, %vm978
    %v980 = vsel %vm874, %v959, %v955
    %v981 = vsel %vm979, %v821, -inf
    %v982 = vsel %vm826, %v981, -inf
    %983 = vmax.xlane.f32.xlu0 %v982
    %v984 = vpop.xlane.xlu0 %983
    %vm985 = vcmp.eq.f32.partialorder %v821, %v984
    %vm986 = vmand %vm979, %vm985
    %v987 = vsel %vm986, %v825, 64
    %v988 = vsel %vm826, %v987, 2147483647
    %v989 = vand.u32 %v988, 65535
    %v990 = vshra.s32 %v988, 16
    %v991 = vcvt.s32.f32 %v989
    %v992 = vcvt.s32.f32 %v990
    %993 = vmin.xlane.f32.xlu0 %v992
    %v994 = vpop.xlane.xlu0 %993
    %vm995 = vcmp.eq.f32.partialorder %v992, %v994
    %v996 = vsel %vm995, %v991, inf
    %997 = vmin.xlane.f32.xlu0 %v996
    %v998 = vpop.xlane.xlu0 %997
    %v999 = vcvt.f32.s32 %v998
    %v1000 = vcvt.f32.s32 %v994
    %v1001 = vshll.u32 %v1000, 16
    %v1002 = vadd.s32 %v1001, %v999
    %vm1003 = vcmp.ne.s32.totalorder %v825, %v1002
    %vm1004 = vmand %vm979, %vm1003
    %v1005 = vsel %vm900, %v984, %v980
    %v1006 = vsel %vm1004, %v821, -inf
    %v1007 = vsel %vm826, %v1006, -inf
    %1008 = vmax.xlane.f32.xlu0 %v1007
    %v1009 = vpop.xlane.xlu0 %1008
    %vm1010 = vcmp.eq.f32.partialorder %v821, %v1009
    %vm1011 = vmand %vm1004, %vm1010
    %v1012 = vsel %vm1011, %v825, 64
    %v1013 = vsel %vm826, %v1012, 2147483647
    %v1014 = vand.u32 %v1013, 65535
    %v1015 = vshra.s32 %v1013, 16
    %v1016 = vcvt.s32.f32 %v1014
    %v1017 = vcvt.s32.f32 %v1015
    %1018 = vmin.xlane.f32.xlu0 %v1017
    %v1019 = vpop.xlane.xlu0 %1018
    %vm1020 = vcmp.eq.f32.partialorder %v1017, %v1019
    %v1021 = vsel %vm1020, %v1016, inf
    %1022 = vmin.xlane.f32.xlu0 %v1021
    %v1023 = vpop.xlane.xlu0 %1022
    %v1024 = vcvt.f32.s32 %v1023
    %v1025 = vcvt.f32.s32 %v1019
    %v1026 = vshll.u32 %v1025, 16
    %v1027 = vadd.s32 %v1026, %v1024
    %vm1028 = vcmp.ne.s32.totalorder %v825, %v1027
    %vm1029 = vmand %vm1004, %vm1028
    %v1030 = vsel %vm926, %v1009, %v1005
    %v1031 = vsel %vm1029, %v821, -inf
    %v1032 = vsel %vm826, %v1031, -inf
    %1033 = vmax.xlane.f32.xlu0 %v1032
    %v1034 = vpop.xlane.xlu0 %1033
    %v1035 = vsel %vm932, %v1034, %v1030
    %v1036 = vld [vmem:[#allocation2] sm:$0x1]
    %v1037 = vadd.s32 %v825, 128
    %vm1038 = vcmask 1040384
    %v1039 = vsel %vm1038, %v1036, inf
    %v1040 = vsel %vm1038, %v933, inf
    %v1041 = vmin.f32 %v1039, %v1040
    %1042 = vmin.xlane.f32.xlu0 %v1041
    %v1043 = vpop.xlane.xlu0 %1042
    %vm1044 = vcmp.eq.f32.partialorder %v1036, %v1043
    %vm1045 = vcmp.eq.f32.partialorder %v933, %v1043
    %v1046 = vsel %vm1044, %v825, 256
    %v1047 = vsel %vm1045, %v1037, 256
    %v1048 = vsel %vm1038, %v1046, 2147483647
    %v1049 = vsel %vm1038, %v1047, 2147483647
    %vm1050 = vcmp.lt.s32.totalorder %v1048, %v1049
    %v1051 = vsel %vm1050, %v1048, %v1049
    %v1052 = vand.u32 %v1051, 65535
    %v1053 = vshra.s32 %v1051, 16
    %v1054 = vcvt.s32.f32 %v1052
    %v1055 = vcvt.s32.f32 %v1053
    %1056 = vmin.xlane.f32.xlu0 %v1055
    %v1057 = vpop.xlane.xlu0 %1056
    %vm1058 = vcmp.eq.f32.partialorder %v1055, %v1057
    %v1059 = vsel %vm1058, %v1054, inf
    %1060 = vmin.xlane.f32.xlu0 %v1059
    %v1061 = vpop.xlane.xlu0 %1060
    %v1062 = vcvt.f32.s32 %v1061
    %v1063 = vcvt.f32.s32 %v1057
    %v1064 = vshll.u32 %v1063, 16
    %v1065 = vadd.s32 %v1064, %v1062
    %vm1066 = vcmp.ne.s32.totalorder %v825, %v1065
    %vm1067 = vcmp.ne.s32.totalorder %v1037, %v1065
    %v1068 = vsel %vm848, %v1043, inf
    %v1069 = vsel %vm1066, %v1036, inf
    %v1070 = vsel %vm1067, %v933, inf
    %v1071 = vsel %vm1038, %v1069, inf
    %v1072 = vsel %vm1038, %v1070, inf
    %v1073 = vmin.f32 %v1071, %v1072
    %1074 = vmin.xlane.f32.xlu0 %v1073
    %v1075 = vpop.xlane.xlu0 %1074
    %vm1076 = vcmp.eq.f32.partialorder %v1036, %v1075
    %vm1077 = vcmp.eq.f32.partialorder %v933, %v1075
    %vm1078 = vmand %vm1066, %vm1076
    %vm1079 = vmand %vm1067, %vm1077
    %v1080 = vsel %vm1078, %v825, 256
    %v1081 = vsel %vm1079, %v1037, 256
    %v1082 = vsel %vm1038, %v1080, 2147483647
    %v1083 = vsel %vm1038, %v1081, 2147483647
    %vm1084 = vcmp.lt.s32.totalorder %v1082, %v1083
    %v1085 = vsel %vm1084, %v1082, %v1083
    %v1086 = vand.u32 %v1085, 65535
    %v1087 = vshra.s32 %v1085, 16
    %v1088 = vcvt.s32.f32 %v1086
    %v1089 = vcvt.s32.f32 %v1087
    %1090 = vmin.xlane.f32.xlu0 %v1089
    %v1091 = vpop.xlane.xlu0 %1090
    %vm1092 = vcmp.eq.f32.partialorder %v1089, %v1091
    %v1093 = vsel %vm1092, %v1088, inf
    %1094 = vmin.xlane.f32.xlu0 %v1093
    %v1095 = vpop.xlane.xlu0 %1094
    %v1096 = vcvt.f32.s32 %v1095
    %v1097 = vcvt.f32.s32 %v1091
    %v1098 = vshll.u32 %v1097, 16
    %v1099 = vadd.s32 %v1098, %v1096
    %vm1100 = vcmp.ne.s32.totalorder %v825, %v1099
    %vm1101 = vcmp.ne.s32.totalorder %v1037, %v1099
    %vm1102 = vmand %vm1066, %vm1100
    %vm1103 = vmand %vm1067, %vm1101
    %v1104 = vsel %vm874, %v1075, %v1068
    %v1105 = vsel %vm1102, %v1036, inf
    %v1106 = vsel %vm1103, %v933, inf
    %v1107 = vsel %vm1038, %v1105, inf
    %v1108 = vsel %vm1038, %v1106, inf
    %v1109 = vmin.f32 %v1107, %v1108
    %1110 = vmin.xlane.f32.xlu0 %v1109
    %v1111 = vpop.xlane.xlu0 %1110
    %vm1112 = vcmp.eq.f32.partialorder %v1036, %v1111
    %vm1113 = vcmp.eq.f32.partialorder %v933, %v1111
    %vm1114 = vmand %vm1102, %vm1112
    %vm1115 = vmand %vm1103, %vm1113
    %v1116 = vsel %vm1114, %v825, 256
    %v1117 = vsel %vm1115, %v1037, 256
    %v1118 = vsel %vm1038, %v1116, 2147483647
    %v1119 = vsel %vm1038, %v1117, 2147483647
    %vm1120 = vcmp.lt.s32.totalorder %v1118, %v1119
    %v1121 = vsel %vm1120, %v1118, %v1119
    %v1122 = vand.u32 %v1121, 65535
    %v1123 = vshra.s32 %v1121, 16
    %v1124 = vcvt.s32.f32 %v1122
    %v1125 = vcvt.s32.f32 %v1123
    %1126 = vmin.xlane.f32.xlu0 %v1125
    %v1127 = vpop.xlane.xlu0 %1126
    %vm1128 = vcmp.eq.f32.partialorder %v1125, %v1127
    %v1129 = vsel %vm1128, %v1124, inf
    %1130 = vmin.xlane.f32.xlu0 %v1129
    %v1131 = vpop.xlane.xlu0 %1130
    %v1132 = vcvt.f32.s32 %v1131
    %v1133 = vcvt.f32.s32 %v1127
    %v1134 = vshll.u32 %v1133, 16
    %v1135 = vadd.s32 %v1134, %v1132
    %vm1136 = vcmp.ne.s32.totalorder %v825, %v1135
    %vm1137 = vcmp.ne.s32.totalorder %v1037, %v1135
    %vm1138 = vmand %vm1102, %vm1136
    %vm1139 = vmand %vm1103, %vm1137
    %v1140 = vsel %vm900, %v1111, %v1104
    %v1141 = vsel %vm1138, %v1036, inf
    %v1142 = vsel %vm1139, %v933, inf
    %v1143 = vsel %vm1038, %v1141, inf
    %v1144 = vsel %vm1038, %v1142, inf
    %v1145 = vmin.f32 %v1143, %v1144
    %1146 = vmin.xlane.f32.xlu0 %v1145
    %v1147 = vpop.xlane.xlu0 %1146
    %vm1148 = vcmp.eq.f32.partialorder %v1036, %v1147
    %vm1149 = vcmp.eq.f32.partialorder %v933, %v1147
    %vm1150 = vmand %vm1138, %vm1148
    %vm1151 = vmand %vm1139, %vm1149
    %v1152 = vsel %vm1150, %v825, 256
    %v1153 = vsel %vm1151, %v1037, 256
    %v1154 = vsel %vm1038, %v1152, 2147483647
    %v1155 = vsel %vm1038, %v1153, 2147483647
    %vm1156 = vcmp.lt.s32.totalorder %v1154, %v1155
    %v1157 = vsel %vm1156, %v1154, %v1155
    %v1158 = vand.u32 %v1157, 65535
    %v1159 = vshra.s32 %v1157, 16
    %v1160 = vcvt.s32.f32 %v1158
    %v1161 = vcvt.s32.f32 %v1159
    %1162 = vmin.xlane.f32.xlu0 %v1161
    %v1163 = vpop.xlane.xlu0 %1162
    %vm1164 = vcmp.eq.f32.partialorder %v1161, %v1163
    %v1165 = vsel %vm1164, %v1160, inf
    %1166 = vmin.xlane.f32.xlu0 %v1165
    %v1167 = vpop.xlane.xlu0 %1166
    %v1168 = vcvt.f32.s32 %v1167
    %v1169 = vcvt.f32.s32 %v1163
    %v1170 = vshll.u32 %v1169, 16
    %v1171 = vadd.s32 %v1170, %v1168
    %vm1172 = vcmp.ne.s32.totalorder %v825, %v1171
    %vm1173 = vcmp.ne.s32.totalorder %v1037, %v1171
    %vm1174 = vmand %vm1138, %vm1172
    %vm1175 = vmand %vm1139, %vm1173
    %v1176 = vsel %vm926, %v1147, %v1140
    %v1177 = vsel %vm1174, %v1036, inf
    %v1178 = vsel %vm1175, %v933, inf
    %v1179 = vsel %vm1038, %v1177, inf
    %v1180 = vsel %vm1038, %v1178, inf
    %v1181 = vmin.f32 %v1179, %v1180
    %1182 = vmin.xlane.f32.xlu0 %v1181
    %v1183 = vpop.xlane.xlu0 %1182
    %v1184 = vsel %vm932, %v1183, %v1176
    %1185 = vst [vmem:[#allocation2] sm:$0x1] %v1184
    %v1186 = vld [vmem:[#allocation3] sm:$0x1]
    %v1187 = vsel %vm1038, %v1186, -inf
    %v1188 = vsel %vm1038, %v1035, -inf
    %v1189 = vmax.f32 %v1187, %v1188
    %1190 = vmax.xlane.f32.xlu0 %v1189
    %v1191 = vpop.xlane.xlu0 %1190
    %vm1192 = vcmp.eq.f32.partialorder %v1186, %v1191
    %vm1193 = vcmp.eq.f32.partialorder %v1035, %v1191
    %v1194 = vsel %vm1192, %v825, 256
    %v1195 = vsel %vm1193, %v1037, 256
    %v1196 = vsel %vm1038, %v1194, 2147483647
    %v1197 = vsel %vm1038, %v1195, 2147483647
    %vm1198 = vcmp.lt.s32.totalorder %v1196, %v1197
    %v1199 = vsel %vm1198, %v1196, %v1197
    %v1200 = vand.u32 %v1199, 65535
    %v1201 = vshra.s32 %v1199, 16
    %v1202 = vcvt.s32.f32 %v1200
    %v1203 = vcvt.s32.f32 %v1201
    %1204 = vmin.xlane.f32.xlu0 %v1203
    %v1205 = vpop.xlane.xlu0 %1204
    %vm1206 = vcmp.eq.f32.partialorder %v1203, %v1205
    %v1207 = vsel %vm1206, %v1202, inf
    %1208 = vmin.xlane.f32.xlu0 %v1207
    %v1209 = vpop.xlane.xlu0 %1208
    %v1210 = vcvt.f32.s32 %v1209
    %v1211 = vcvt.f32.s32 %v1205
    %v1212 = vshll.u32 %v1211, 16
    %v1213 = vadd.s32 %v1212, %v1210
    %vm1214 = vcmp.ne.s32.totalorder %v825, %v1213
    %vm1215 = vcmp.ne.s32.totalorder %v1037, %v1213
    %v1216 = vsel %vm848, %v1191, -inf
    %v1217 = vsel %vm1214, %v1186, -inf
    %v1218 = vsel %vm1215, %v1035, -inf
    %v1219 = vsel %vm1038, %v1217, -inf
    %v1220 = vsel %vm1038, %v1218, -inf
    %v1221 = vmax.f32 %v1219, %v1220
    %1222 = vmax.xlane.f32.xlu0 %v1221
    %v1223 = vpop.xlane.xlu0 %1222
    %vm1224 = vcmp.eq.f32.partialorder %v1186, %v1223
    %vm1225 = vcmp.eq.f32.partialorder %v1035, %v1223
    %vm1226 = vmand %vm1214, %vm1224
    %vm1227 = vmand %vm1215, %vm1225
    %v1228 = vsel %vm1226, %v825, 256
    %v1229 = vsel %vm1227, %v1037, 256
    %v1230 = vsel %vm1038, %v1228, 2147483647
    %v1231 = vsel %vm1038, %v1229, 2147483647
    %vm1232 = vcmp.lt.s32.totalorder %v1230, %v1231
    %v1233 = vsel %vm1232, %v1230, %v1231
    %v1234 = vand.u32 %v1233, 65535
    %v1235 = vshra.s32 %v1233, 16
    %v1236 = vcvt.s32.f32 %v1234
    %v1237 = vcvt.s32.f32 %v1235
    %1238 = vmin.xlane.f32.xlu0 %v1237
    %v1239 = vpop.xlane.xlu0 %1238
    %vm1240 = vcmp.eq.f32.partialorder %v1237, %v1239
    %v1241 = vsel %vm1240, %v1236, inf
    %1242 = vmin.xlane.f32.xlu0 %v1241
    %v1243 = vpop.xlane.xlu0 %1242
    %v1244 = vcvt.f32.s32 %v1243
    %v1245 = vcvt.f32.s32 %v1239
    %v1246 = vshll.u32 %v1245, 16
    %v1247 = vadd.s32 %v1246, %v1244
    %vm1248 = vcmp.ne.s32.totalorder %v825, %v1247
    %vm1249 = vcmp.ne.s32.totalorder %v1037, %v1247
    %vm1250 = vmand %vm1214, %vm1248
    %vm1251 = vmand %vm1215, %vm1249
    %v1252 = vsel %vm874, %v1223, %v1216
    %v1253 = vsel %vm1250, %v1186, -inf
    %v1254 = vsel %vm1251, %v1035, -inf
    %v1255 = vsel %vm1038, %v1253, -inf
    %v1256 = vsel %vm1038, %v1254, -inf
    %v1257 = vmax.f32 %v1255, %v1256
    %1258 = vmax.xlane.f32.xlu0 %v1257
    %v1259 = vpop.xlane.xlu0 %1258
    %vm1260 = vcmp.eq.f32.partialorder %v1186, %v1259
    %vm1261 = vcmp.eq.f32.partialorder %v1035, %v1259
    %vm1262 = vmand %vm1250, %vm1260
    %vm1263 = vmand %vm1251, %vm1261
    %v1264 = vsel %vm1262, %v825, 256
    %v1265 = vsel %vm1263, %v1037, 256
    %v1266 = vsel %vm1038, %v1264, 2147483647
    %v1267 = vsel %vm1038, %v1265, 2147483647
    %vm1268 = vcmp.lt.s32.totalorder %v1266, %v1267
    %v1269 = vsel %vm1268, %v1266, %v1267
    %v1270 = vand.u32 %v1269, 65535
    %v1271 = vshra.s32 %v1269, 16
    %v1272 = vcvt.s32.f32 %v1270
    %v1273 = vcvt.s32.f32 %v1271
    %1274 = vmin.xlane.f32.xlu0 %v1273
    %v1275 = vpop.xlane.xlu0 %1274
    %vm1276 = vcmp.eq.f32.partialorder %v1273, %v1275
    %v1277 = vsel %vm1276, %v1272, inf
    %1278 = vmin.xlane.f32.xlu0 %v1277
    %v1279 = vpop.xlane.xlu0 %1278
    %v1280 = vcvt.f32.s32 %v1279
    %v1281 = vcvt.f32.s32 %v1275
    %v1282 = vshll.u32 %v1281, 16
    %v1283 = vadd.s32 %v1282, %v1280
    %vm1284 = vcmp.ne.s32.totalorder %v825, %v1283
    %vm1285 = vcmp.ne.s32.totalorder %v1037, %v1283
    %vm1286 = vmand %vm1250, %vm1284
    %vm1287 = vmand %vm1251, %vm1285
    %v1288 = vsel %vm900, %v1259, %v1252
    %v1289 = vsel %vm1286, %v1186, -inf
    %v1290 = vsel %vm1287, %v1035, -inf
    %v1291 = vsel %vm1038, %v1289, -inf
    %v1292 = vsel %vm1038, %v1290, -inf
    %v1293 = vmax.f32 %v1291, %v1292
    %1294 = vmax.xlane.f32.xlu0 %v1293
    %v1295 = vpop.xlane.xlu0 %1294
    %vm1296 = vcmp.eq.f32.partialorder %v1186, %v1295
    %vm1297 = vcmp.eq.f32.partialorder %v1035, %v1295
    %vm1298 = vmand %vm1286, %vm1296
    %vm1299 = vmand %vm1287, %vm1297
    %v1300 = vsel %vm1298, %v825, 256
    %v1301 = vsel %vm1299, %v1037, 256
    %v1302 = vsel %vm1038, %v1300, 2147483647
    %v1303 = vsel %vm1038, %v1301, 2147483647
    %vm1304 = vcmp.lt.s32.totalorder %v1302, %v1303
    %v1305 = vsel %vm1304, %v1302, %v1303
    %v1306 = vand.u32 %v1305, 65535
    %v1307 = vshra.s32 %v1305, 16
    %v1308 = vcvt.s32.f32 %v1306
    %v1309 = vcvt.s32.f32 %v1307
    %1310 = vmin.xlane.f32.xlu0 %v1309
    %v1311 = vpop.xlane.xlu0 %1310
    %vm1312 = vcmp.eq.f32.partialorder %v1309, %v1311
    %v1313 = vsel %vm1312, %v1308, inf
    %1314 = vmin.xlane.f32.xlu0 %v1313
    %v1315 = vpop.xlane.xlu0 %1314
    %v1316 = vcvt.f32.s32 %v1315
    %v1317 = vcvt.f32.s32 %v1311
    %v1318 = vshll.u32 %v1317, 16
    %v1319 = vadd.s32 %v1318, %v1316
    %vm1320 = vcmp.ne.s32.totalorder %v825, %v1319
    %vm1321 = vcmp.ne.s32.totalorder %v1037, %v1319
    %vm1322 = vmand %vm1286, %vm1320
    %vm1323 = vmand %vm1287, %vm1321
    %v1324 = vsel %vm926, %v1295, %v1288
    %v1325 = vsel %vm1322, %v1186, -inf
    %v1326 = vsel %vm1323, %v1035, -inf
    %v1327 = vsel %vm1038, %v1325, -inf
    %v1328 = vsel %vm1038, %v1326, -inf
    %v1329 = vmax.f32 %v1327, %v1328
    %1330 = vmax.xlane.f32.xlu0 %v1329
    %v1331 = vpop.xlane.xlu0 %1330
    %v1332 = vsel %vm932, %v1331, %v1324
    %1333 = vst [vmem:[#allocation3] sm:$0x1] %v1332
    // Predicated region
    $region42: #{tpu_custom_call.1} parent=1 // pred_check
      %p1334 = pneg %p46
    $region43: #{tpu_custom_call.1} parent=1 // pred_check_branch
      %1336 = sbr.rel (%p1334) target = $region45
    $region44: #{tpu_custom_call.1} parent=1 // pred_region
      %vm1337 = vcmp.lt.s32.totalorder %v825, 5
      %v1338 = vld [vmem:[#allocation2] sm:$0x1]
      %v1339 = vsel %vm1337, %v1338, 0.0
      %v1340 = vld [vmem:[#allocation3] sm:$0x1]
      %v1341 = vsel %vm1337, %v1340, 0.0
      %v1342 = vld [vmem:[%s2] sm:$0xff]
      %v1343 = vld [vmem:[%s2 + $0x8] sm:$0xff]
      %v1344 = vld [vmem:[%s2 + $0x10] sm:$0xff]
      %v1345 = vld [vmem:[%s2 + $0x18] sm:$0xff]
      %v1346 = vld [vmem:[%s2 + $0x20] sm:$0xff]
      %v1347 = vld [vmem:[%s2 + $0x28] sm:$0xff]
      %v1348 = vld [vmem:[%s2 + $0x30] sm:$0xff]
      %v1349 = vld [vmem:[%s2 + $0x38] sm:$0xff]
      %v1350 = vld [vmem:[%s2 + $0x40] sm:$0xff]
      %v1351 = vld [vmem:[%s2 + $0x48] sm:$0xff]
      %v1352 = vld [vmem:[%s2 + $0x50] sm:$0xff]
      %v1353 = vld [vmem:[%s2 + $0x58] sm:$0xff]
      %v1354 = vld [vmem:[%s2 + $0x60] sm:$0xff]
      %v1355 = vld [vmem:[%s2 + $0x68] sm:$0xff]
      %v1356 = vld [vmem:[%s2 + $0x70] sm:$0xff]
      %v1357 = vld [vmem:[%s2 + $0x78] sm:$0xff]
      %v1358 = vld [vmem:[%s2 + $0x80] sm:$0xff]
      %v1359 = vld [vmem:[%s2 + $0x88] sm:$0xff]
      %v1360 = vld [vmem:[%s2 + $0x90] sm:$0xff]
      %v1361 = vld [vmem:[%s2 + $0x98] sm:$0xff]
      %v1362 = vld [vmem:[%s2 + $0xa0] sm:$0xff]
      %v1363 = vld [vmem:[%s2 + $0xa8] sm:$0xff]
      %v1364 = vld [vmem:[%s2 + $0xb0] sm:$0xff]
      %v1365 = vld [vmem:[%s2 + $0xb8] sm:$0xff]
      %v1366 = vld [vmem:[%s2 + $0xc0] sm:$0xff]
      %v1367 = vld [vmem:[%s2 + $0xc8] sm:$0xff]
      %v1368 = vld [vmem:[%s2 + $0xd0] sm:$0xff]
      %v1369 = vld [vmem:[%s2 + $0xd8] sm:$0xff]
      %v1370 = vld [vmem:[%s2 + $0xe0] sm:$0xff]
      %v1371 = vld [vmem:[%s2 + $0xe8] sm:$0xff]
      %v1372 = vld [vmem:[%s2 + $0xf0] sm:$0xff]
      %v1373 = vld [vmem:[%s2 + $0xf8] sm:$0xff]
      %v1374 = vld [vmem:[%s2 + $0x100] sm:$0xff]
      %v1375 = vld [vmem:[%s2 + $0x108] sm:$0xff]
      %v1376 = vld [vmem:[%s2 + $0x110] sm:$0xff]
      %v1377 = vld [vmem:[%s2 + $0x118] sm:$0xff]
      %v1378 = vld [vmem:[%s2 + $0x120] sm:$0xff]
      %v1379 = vld [vmem:[%s2 + $0x128] sm:$0xff]
      %v1380 = vld [vmem:[%s2 + $0x130] sm:$0xff]
      %v1381 = vld [vmem:[%s2 + $0x138] sm:$0xff]
      %v1382 = vld [vmem:[%s2 + $0x140] sm:$0xff]
      %v1383 = vld [vmem:[%s2 + $0x148] sm:$0xff]
      %v1384 = vld [vmem:[%s2 + $0x150] sm:$0xff]
      %v1385 = vld [vmem:[%s2 + $0x158] sm:$0xff]
      %v1386 = vld [vmem:[%s2 + $0x160] sm:$0xff]
      %v1387 = vld [vmem:[%s2 + $0x168] sm:$0xff]
      %v1388 = vld [vmem:[%s2 + $0x170] sm:$0xff]
      %v1389 = vld [vmem:[%s2 + $0x178] sm:$0xff]
      %v1390 = vld [vmem:[%s2 + $0x180] sm:$0xff]
      %v1391 = vld [vmem:[%s2 + $0x188] sm:$0xff]
      %v1392 = vld [vmem:[%s2 + $0x190] sm:$0xff]
      %v1393 = vld [vmem:[%s2 + $0x198] sm:$0xff]
      %v1394 = vld [vmem:[%s2 + $0x1a0] sm:$0xff]
      %v1395 = vld [vmem:[%s2 + $0x1a8] sm:$0xff]
      %v1396 = vld [vmem:[%s2 + $0x1b0] sm:$0xff]
      %v1397 = vld [vmem:[%s2 + $0x1b8] sm:$0xff]
      %v1398 = vld [vmem:[%s2 + $0x1c0] sm:$0xff]
      %v1399 = vld [vmem:[%s2 + $0x1c8] sm:$0xff]
      %v1400 = vld [vmem:[%s2 + $0x1d0] sm:$0xff]
      %v1401 = vld [vmem:[%s2 + $0x1d8] sm:$0xff]
      %v1402 = vld [vmem:[%s2 + $0x1e0] sm:$0xff]
      %v1403 = vld [vmem:[%s2 + $0x1e8] sm:$0xff]
      %v1404 = vld [vmem:[%s2 + $0x1f0] sm:$0xff]
      %v1405 = vld [vmem:[%s2 + $0x1f8] sm:$0xff]
      %v1406 = vld [vmem:[%s3] sm:$0x3]
      %v1408 = vlaneseq
      %v1409 = vshrl.u32 %v1408, 7
      %v1410 = vsub.s32 0, %v1409
      %v1411 = vrot.slane %v1406, %v1410
      %v1412 = vlaneseq
      %v1413 = vshrl.u32 %v1412, 7
      %v1414 = vsub.s32 1, %v1413
      %v1415 = vrot.slane %v1406, %v1414
      %1418 = vmatprep.subr.mxu0 %v1343
      %1419 = vmatpush1.msra.mxu0 %v1342
      %1420 = vmatprep.subr.mxu0 %v1345
      %1421 = vmatpush1.msra.mxu0 %v1344
      %1422 = vmatprep.subr.mxu0 %v1347
      %1423 = vmatpush1.msra.mxu0 %v1346
      %1424 = vmatprep.subr.mxu0 %v1349
      %1425 = vmatpush1.msra.mxu0 %v1348
      %1426 = vmatprep.subr.mxu0 %v1351
      %1427 = vmatpush1.msra.mxu0 %v1350
      %1428 = vmatprep.subr.mxu0 %v1353
      %1429 = vmatpush1.msra.mxu0 %v1352
      %1430 = vmatprep.subr.mxu0 %v1355
      %1431 = vmatpush1.msra.mxu0 %v1354
      %1432 = vmatprep.subr.mxu0 %v1357
      %1433 = vmatpush1.msra.mxu0 %v1356
      %1434 = vmatprep.subr.mxu0 %v1359
      %1435 = vmatpush1.msra.mxu0 %v1358
      %1436 = vmatprep.subr.mxu0 %v1361
      %1437 = vmatpush1.msra.mxu0 %v1360
      %1438 = vmatprep.subr.mxu0 %v1363
      %1439 = vmatpush1.msra.mxu0 %v1362
      %1440 = vmatprep.subr.mxu0 %v1365
      %1441 = vmatpush1.msra.mxu0 %v1364
      %1442 = vmatprep.subr.mxu0 %v1367
      %1443 = vmatpush1.msra.mxu0 %v1366
      %1444 = vmatprep.subr.mxu0 %v1369
      %1445 = vmatpush1.msra.mxu0 %v1368
      %1446 = vmatprep.subr.mxu0 %v1371
      %1447 = vmatpush1.msra.mxu0 %v1370
      %1448 = vmatprep.subr.mxu0 %v1373
      %1449 = vmatpush1.msra.mxu0 %v1372
      %1450 = vmatprep.subr.mxu0 %v1375
      %1451 = vmatpush1.msra.mxu0 %v1374
      %1452 = vmatprep.subr.mxu0 %v1377
      %1453 = vmatpush1.msra.mxu0 %v1376
      %1454 = vmatprep.subr.mxu0 %v1379
      %1455 = vmatpush1.msra.mxu0 %v1378
      %1456 = vmatprep.subr.mxu0 %v1381
      %1457 = vmatpush1.msra.mxu0 %v1380
      %1458 = vmatprep.subr.mxu0 %v1383
      %1459 = vmatpush1.msra.mxu0 %v1382
      %1460 = vmatprep.subr.mxu0 %v1385
      %1461 = vmatpush1.msra.mxu0 %v1384
      %1462 = vmatprep.subr.mxu0 %v1387
      %1463 = vmatpush1.msra.mxu0 %v1386
      %1464 = vmatprep.subr.mxu0 %v1389
      %1465 = vmatpush1.msra.mxu0 %v1388
      %1466 = vmatprep.subr.mxu0 %v1391
      %1467 = vmatpush1.msra.mxu0 %v1390
      %1468 = vmatprep.subr.mxu0 %v1393
      %1469 = vmatpush1.msra.mxu0 %v1392
      %1470 = vmatprep.subr.mxu0 %v1395
      %1471 = vmatpush1.msra.mxu0 %v1394
      %1472 = vmatprep.subr.mxu0 %v1397
      %1473 = vmatpush1.msra.mxu0 %v1396
      %1474 = vmatprep.subr.mxu0 %v1399
      %1475 = vmatpush1.msra.mxu0 %v1398
      %1476 = vmatprep.subr.mxu0 %v1401
      %1477 = vmatpush1.msra.mxu0 %v1400
      %1478 = vmatprep.subr.mxu0 %v1403
      %1479 = vmatpush1.msra.mxu0 %v1402
      %1480 = vmatprep.subr.mxu0 %v1405
      %1481 = vmatpush1.msra.mxu0 %v1404
      %1482 = vmatprep.mubr.f32.mxu0 %v1341
      %1483 = vmatmul.mubr.f32.gmra.mrb[0].mxu0 %v1339
      %v1484 = vpop.f32.mrb[0].mxu0
      %v1485 = vadd.f32 %v1411, %v1484
      %v1486 = vpop.f32.mrb[0].mxu0
      %v1487 = vadd.f32 %v1415, %v1486
      %1488 = vdwg.mxu0
      %v1489 = vxor.u32 %v1485, 2147483648
      %v1490 = vxor.u32 %v1487, 2147483648
      %v1491 = vmul.f32 %v1489, 1.442695
      %v1492 = vpow.pop %v1491
      %v1493 = vmul.f32 %v1490, 1.442695
      %v1494 = vpow.pop %v1493
      %v1495 = vadd.f32 %v1492, 1.0
      %v1496 = vadd.f32 %v1494, 1.0
      %v1497 = vrcp.pop %v1495
      %v1498 = vmul.f32 1.0, %v1497
      %v1499 = vrcp.pop %v1496
      %v1500 = vmul.f32 1.0, %v1499
      %v1501 = vld [vmem:[%s4] sm:$0xff]
      %v1502 = vld [vmem:[%s4 + $0x8] sm:$0xff]
      %v1503 = vld [vmem:[%s4 + $0x10] sm:$0xff]
      %v1504 = vld [vmem:[%s4 + $0x18] sm:$0xff]
      %v1505 = vld [vmem:[%s4 + $0x20] sm:$0xff]
      %v1506 = vld [vmem:[%s4 + $0x28] sm:$0xff]
      %v1507 = vld [vmem:[%s4 + $0x30] sm:$0xff]
      %v1508 = vld [vmem:[%s4 + $0x38] sm:$0xff]
      %v1509 = vld [vmem:[%s4 + $0x40] sm:$0xff]
      %v1510 = vld [vmem:[%s4 + $0x48] sm:$0xff]
      %v1511 = vld [vmem:[%s4 + $0x50] sm:$0xff]
      %v1512 = vld [vmem:[%s4 + $0x58] sm:$0xff]
      %v1513 = vld [vmem:[%s4 + $0x60] sm:$0xff]
      %v1514 = vld [vmem:[%s4 + $0x68] sm:$0xff]
      %v1515 = vld [vmem:[%s4 + $0x70] sm:$0xff]
      %v1516 = vld [vmem:[%s4 + $0x78] sm:$0xff]
      %v1517 = vld [vmem:[%s4 + $0x80] sm:$0xff]
      %v1518 = vld [vmem:[%s4 + $0x88] sm:$0xff]
      %v1519 = vld [vmem:[%s4 + $0x90] sm:$0xff]
      %v1520 = vld [vmem:[%s4 + $0x98] sm:$0xff]
      %v1521 = vld [vmem:[%s4 + $0xa0] sm:$0xff]
      %v1522 = vld [vmem:[%s4 + $0xa8] sm:$0xff]
      %v1523 = vld [vmem:[%s4 + $0xb0] sm:$0xff]
      %v1524 = vld [vmem:[%s4 + $0xb8] sm:$0xff]
      %v1525 = vld [vmem:[%s4 + $0xc0] sm:$0xff]
      %v1526 = vld [vmem:[%s5] sm:$0x1]
      %vm1527 = vcmask 588800
      %v1529 = vsel %vm1527, %v1500, 0
      %1531 = vmatprep.subr.mxu0 0.0
      %1532 = vmatpush1.msra.mxu0 %v1501
      %1533 = vmatprep.subr.mxu0 0.0
      %1534 = vmatpush1.msra.mxu0 %v1502
      %1535 = vmatprep.subr.mxu0 0.0
      %1536 = vmatpush1.msra.mxu0 %v1503
      %1537 = vmatprep.subr.mxu0 0.0
      %1538 = vmatpush1.msra.mxu0 %v1504
      %1539 = vmatprep.subr.mxu0 0.0
      %1540 = vmatpush1.msra.mxu0 %v1505
      %1541 = vmatprep.subr.mxu0 0.0
      %1542 = vmatpush1.msra.mxu0 %v1506
      %1543 = vmatprep.subr.mxu0 0.0
      %1544 = vmatpush1.msra.mxu0 %v1507
      %1545 = vmatprep.subr.mxu0 0.0
      %1546 = vmatpush1.msra.mxu0 %v1508
      %1547 = vmatprep.subr.mxu0 0.0
      %1548 = vmatpush1.msra.mxu0 %v1509
      %1549 = vmatprep.subr.mxu0 0.0
      %1550 = vmatpush1.msra.mxu0 %v1510
      %1551 = vmatprep.subr.mxu0 0.0
      %1552 = vmatpush1.msra.mxu0 %v1511
      %1553 = vmatprep.subr.mxu0 0.0
      %1554 = vmatpush1.msra.mxu0 %v1512
      %1555 = vmatprep.subr.mxu0 0.0
      %1556 = vmatpush1.msra.mxu0 %v1513
      %1557 = vmatprep.subr.mxu0 0.0
      %1558 = vmatpush1.msra.mxu0 %v1514
      %1559 = vmatprep.subr.mxu0 0.0
      %1560 = vmatpush1.msra.mxu0 %v1515
      %1561 = vmatprep.subr.mxu0 0.0
      %1562 = vmatpush1.msra.mxu0 %v1516
      %1563 = vmatprep.subr.mxu0 0.0
      %1564 = vmatpush1.msra.mxu0 %v1517
      %1565 = vmatprep.subr.mxu0 0.0
      %1566 = vmatpush1.msra.mxu0 %v1518
      %1567 = vmatprep.subr.mxu0 0.0
      %1568 = vmatpush1.msra.mxu0 %v1519
      %1569 = vmatprep.subr.mxu0 0.0
      %1570 = vmatpush1.msra.mxu0 %v1520
      %1571 = vmatprep.subr.mxu0 0.0
      %1572 = vmatpush1.msra.mxu0 %v1521
      %1573 = vmatprep.subr.mxu0 0.0
      %1574 = vmatpush1.msra.mxu0 %v1522
      %1575 = vmatprep.subr.mxu0 0.0
      %1576 = vmatpush1.msra.mxu0 %v1523
      %1577 = vmatprep.subr.mxu0 0.0
      %1578 = vmatpush1.msra.mxu0 %v1524
      %1579 = vmatprep.subr.mxu0 0.0
      %1580 = vmatpush1.msra.mxu0 %v1525
      %1581 = vmatprep.subr.mxu0 0.0
      %1582 = vmatpush1.msra.mxu0 0.0
      %1583 = vmatprep.subr.mxu0 0.0
      %1584 = vmatpush1.msra.mxu0 0.0
      %1585 = vmatprep.subr.mxu0 0.0
      %1586 = vmatpush1.msra.mxu0 0.0
      %1587 = vmatprep.subr.mxu0 0.0
      %1588 = vmatpush1.msra.mxu0 0.0
      %1589 = vmatprep.subr.mxu0 0.0
      %1590 = vmatpush1.msra.mxu0 0.0
      %1591 = vmatprep.subr.mxu0 0.0
      %1592 = vmatpush1.msra.mxu0 0.0
      %1593 = vmatprep.subr.mxu0 0.0
      %1594 = vmatpush1.msra.mxu0 0.0
      %1595 = vmatprep.mubr.f32.mxu0 %v1529
      %1596 = vmatmul.mubr.f32.gmra.mrb[0].mxu0 %v1498
      %v1597 = vpop.f32.mrb[0].mxu0
      %v1598 = vadd.f32 %v1526, %v1597
      %v1599 = vpop.f32.mrb[0].mxu0
      %1600 = vdwg.mxu0
      %v1601 = vxor.u32 %v1598, 2147483648
      %v1602 = vmul.f32 %v1601, 1.442695
      %v1603 = vpow.pop %v1602
      %v1604 = vadd.f32 %v1603, 1.0
      %v1605 = vrcp.pop %v1604
      %v1606 = vmul.f32 1.0, %v1605
      %v1607 = vld [vmem:[%s6] sm:$0xff]
      %v1608 = vld [vmem:[%s6 + $0x8] sm:$0xff]
      %v1609 = vld [vmem:[%s6 + $0x10] sm:$0xff]
      %v1610 = vld [vmem:[%s6 + $0x18] sm:$0xff]
      %v1611 = vld [vmem:[%s6 + $0x20] sm:$0xff]
      %v1612 = vld [vmem:[%s6 + $0x28] sm:$0xff]
      %v1613 = vld [vmem:[%s6 + $0x30] sm:$0xff]
      %v1614 = vld [vmem:[%s6 + $0x38] sm:$0xff]
      %v1615 = vld [vmem:[%s6 + $0x40] sm:$0xff]
      %v1616 = vld [vmem:[%s6 + $0x48] sm:$0xff]
      %v1617 = vld [vmem:[%s6 + $0x50] sm:$0xff]
      %v1618 = vld [vmem:[%s6 + $0x58] sm:$0xff]
      %v1619 = vld [vmem:[%s6 + $0x60] sm:$0xf]
      %v1620 = vld [vmem:[#allocation4] sm:$0x1]
      %vm1621 = vcmask 818176
      %v1623 = vsel %vm1621, %v1606, 0
      %vm1625 = vcmask 1043456
      %v1627 = vsel %vm1625, %v1619, 0
      %1629 = vmatprep.subr.mxu0 0.0
      %1630 = vmatpush1.msra.mxu0 %v1607
      %1631 = vmatprep.subr.mxu0 0.0
      %1632 = vmatpush1.msra.mxu0 %v1608
      %1633 = vmatprep.subr.mxu0 0.0
      %1634 = vmatpush1.msra.mxu0 %v1609
      %1635 = vmatprep.subr.mxu0 0.0
      %1636 = vmatpush1.msra.mxu0 %v1610
      %1637 = vmatprep.subr.mxu0 0.0
      %1638 = vmatpush1.msra.mxu0 %v1611
      %1639 = vmatprep.subr.mxu0 0.0
      %1640 = vmatpush1.msra.mxu0 %v1612
      %1641 = vmatprep.subr.mxu0 0.0
      %1642 = vmatpush1.msra.mxu0 %v1613
      %1643 = vmatprep.subr.mxu0 0.0
      %1644 = vmatpush1.msra.mxu0 %v1614
      %1645 = vmatprep.subr.mxu0 0.0
      %1646 = vmatpush1.msra.mxu0 %v1615
      %1647 = vmatprep.subr.mxu0 0.0
      %1648 = vmatpush1.msra.mxu0 %v1616
      %1649 = vmatprep.subr.mxu0 0.0
      %1650 = vmatpush1.msra.mxu0 %v1617
      %1651 = vmatprep.subr.mxu0 0.0
      %1652 = vmatpush1.msra.mxu0 %v1618
      %1653 = vmatprep.subr.mxu0 0.0
      %1654 = vmatpush1.msra.mxu0 %v1627
      %1655 = vmatprep.subr.mxu0 0.0
      %1656 = vmatpush1.msra.mxu0 0.0
      %1657 = vmatprep.subr.mxu0 0.0
      %1658 = vmatpush1.msra.mxu0 0.0
      %1659 = vmatprep.subr.mxu0 0.0
      %1660 = vmatpush1.msra.mxu0 0.0
      %1661 = vmatprep.subr.mxu0 0.0
      %1662 = vmatpush1.msra.mxu0 0.0
      %1663 = vmatprep.subr.mxu0 0.0
      %1664 = vmatpush1.msra.mxu0 0.0
      %1665 = vmatprep.subr.mxu0 0.0
      %1666 = vmatpush1.msra.mxu0 0.0
      %1667 = vmatprep.subr.mxu0 0.0
      %1668 = vmatpush1.msra.mxu0 0.0
      %1669 = vmatprep.subr.mxu0 0.0
      %1670 = vmatpush1.msra.mxu0 0.0
      %1671 = vmatprep.subr.mxu0 0.0
      %1672 = vmatpush1.msra.mxu0 0.0
      %1673 = vmatprep.subr.mxu0 0.0
      %1674 = vmatpush1.msra.mxu0 0.0
      %1675 = vmatprep.subr.mxu0 0.0
      %1676 = vmatpush1.msra.mxu0 0.0
      %1677 = vmatprep.subr.mxu0 0.0
      %1678 = vmatpush1.msra.mxu0 0.0
      %1679 = vmatprep.subr.mxu0 0.0
      %1680 = vmatpush1.msra.mxu0 0.0
      %1681 = vmatprep.subr.mxu0 0.0
      %1682 = vmatpush1.msra.mxu0 0.0
      %1683 = vmatprep.subr.mxu0 0.0
      %1684 = vmatpush1.msra.mxu0 0.0
      %1685 = vmatprep.subr.mxu0 0.0
      %1686 = vmatpush1.msra.mxu0 0.0
      %1687 = vmatprep.subr.mxu0 0.0
      %1688 = vmatpush1.msra.mxu0 0.0
      %1689 = vmatprep.subr.mxu0 0.0
      %1690 = vmatpush1.msra.mxu0 0.0
      %1691 = vmatprep.subr.mxu0 0.0
      %1692 = vmatpush1.msra.mxu0 0.0
      %1693 = vmatprep.mubr.f32.mxu0 0.0
      %1694 = vmatmul.mubr.f32.gmra.mrb[0].mxu0 %v1623
      %v1695 = vpop.f32.mrb[0].mxu0
      %v1696 = vadd.f32 %v1620, %v1695
      %v1697 = vpop.f32.mrb[0].mxu0
      %1698 = vdwg.mxu0
      %vm1699 = vcmask 0
      %1700 = vst.msk [vmem:[#allocation8] sm:$0x1] %vm1699, %v1696
    $region45: #{tpu_custom_call.1} parent=1 // pred_fallthru
      _
    // Predicated region
    $region46: #{tpu_custom_call.1} parent=1 // pred_check
      _
    $region47: #{tpu_custom_call.1} parent=1 // pred_check_branch
      %1702 = sbr.rel (0) target = $region49
    $region48: #{tpu_custom_call.1} parent=1 // pred_region
      %s1704 = ssub.s32 16, 16
      %1705 = vsyncadd [#allocation7], %s1704
      %s1707 = sshll.u32 [#allocation8], 4
      %s1708 = int_to_ptr.vmem [resolvable:$true] %s1707
      %1710 = dma.vmem_to_hbm [thread:$0]  %s1708, 16, %s8, [#allocation7]
    $region49: #{tpu_custom_call.1} parent=1 // pred_fallthru
      _
    // Predicated region
    $region50: #{tpu_custom_call.1} parent=1 // pred_check
      _
    $region51: #{tpu_custom_call.1} parent=1 // pred_check_branch
      %1712 = sbr.rel (0) target = $region53
    $region52: #{tpu_custom_call.1} parent=1 // pred_region
      %1713 = dma.done [#allocation7], 16
    $region53: #{tpu_custom_call.1} parent=1 // pred_fallthru
      _
    %1714 = vsyncpa [#allocation6], 1
    %1715 = vsyncpa [#allocation7], 1

</llo_original>
